<compile_context>
chip_gen: v6e
topology: v6e:2x2x1
jax: 0.10.0
libtpu: 0.0.40
codegen_flags: <defaults>
</compile_context>

<pallas_src>
import functools

import jax
import jax.numpy as jnp
import numpy as np
from jax.experimental import pallas as pl
from jax.experimental.pallas import tpu as pltpu

LANES = 128   # channel axis zero-padded to the TPU lane width
SLOP = 8      # extra zero rows per scratch so stride-2 tap loads never go OOB


def _ru8(n):
    return ((n + 7) // 8) * 8


def _conv_out_len(L, k, s, p):
    return (L + 2 * p - k) // s + 1


# ---------------------------------------------------------------------------
# Fused forward kernel: one grid step == one block of `bblk` samples
# ---------------------------------------------------------------------------
def _convbase_kernel(x_ref, w1_ref, w2_ref, w3_ref, wf_ref, b_ref, o_ref,
                     h1s_ref, h2s_ref, h3s_ref, *,
                     bblk, L1, L2, L3, S0, S1, S2, S3):
    """Layouts (lane-dense: channels on lanes 0..C-1, zero elsewhere):
      x_ref : (bblk*S0, 128) f32, per-sample rows [0, x[0..L-1], 0..]; the input
              value is replicated across all 128 lanes so conv1 is pure VPU.
      h1s/h2s: (bblk*S{1,2}+SLOP, 128) f32 scratch, per-sample rows
              [0, h[0..Li-1], 0..]; stride-2 row slices feed the tap GEMMs.
      h3s   : (bblk*S3, 128) f32 scratch, per-sample rows h3[0..L3-1] (+ junk
              rows >= L3 that the fc taps never read).
      o_ref : (bblk, 128) f32 logits (lanes >= num_classes are don't-care)."""
    f32 = jnp.float32
    bf16 = jnp.bfloat16

    bias = b_ref[...]                       # (8, 128) f32: rows 0..3 = b1,b2,b3,bf
    w1 = w1_ref[...]                        # (8, 128) f32: rows 0..4 = conv1 taps

    # ---------------- conv1 (Cin=1, k=5, s=2, p=1): VPU only ----------------
    # Decimate the padded input once into even/odd position planes (2 strided
    # loads), then each tap is a contiguous slice + broadcast FMA.
    half0 = S0 // 2
    ev = x_ref[pl.ds(0, bblk * half0, 2), :].reshape(bblk, half0, LANES)
    od = x_ref[pl.ds(1, bblk * half0, 2), :].reshape(bblk, half0, LANES)
    taps1 = (ev[:, 0:L1, :],            # x_pad[2j]
             od[:, 0:L1, :],            # x_pad[2j+1]
             ev[:, 1:1 + L1, :],        # x_pad[2j+2]
             od[:, 1:1 + L1, :],        # x_pad[2j+3]
             ev[:, 2:2 + L1, :])        # x_pad[2j+4]
    acc1 = taps1[0] * w1[0:1, :]
    for k in range(1, 5):                                    # static unroll
        acc1 = acc1 + taps1[k] * w1[k:k + 1, :]
    h1 = jnp.maximum(acc1 + bias[0:1, :], 0.0)               # (bblk, L1, 128) f32

    # One dense, aligned store of the padded h1 block: per-sample [0, h1, 0..].
    p1 = jnp.concatenate(
        [jnp.zeros((bblk, 1, LANES), f32), h1,
         jnp.zeros((bblk, S1 - 1 - L1, LANES), f32)], axis=1)
    h1s_ref[0:bblk * S1, :] = p1.reshape(bblk * S1, LANES)
    # Zero the slop rows so the k=2 tap load (which touches row bblk*S1) reads 0.
    h1s_ref[pl.ds(bblk * S1, SLOP), :] = jnp.zeros((SLOP, LANES), f32)

    def conv_taps_mxu(src_ref, w_ref, rows, n_taps):
        # y = sum_k (stride-2 row slice starting at k) @ W_k   (bf16 MXU, f32 acc)
        acc = None
        for k in range(n_taps):                              # static unroll
            a = src_ref[pl.ds(k, rows, 2), :].astype(bf16)
            part = jnp.dot(a, w_ref[k], preferred_element_type=f32)
            acc = part if acc is None else acc + part
        return acc

    # ---------------- conv2 (k=3, s=2, p=1): MXU, M = bblk*S1/2 -------------
    m2 = bblk * (S1 // 2)
    h2 = jnp.maximum(conv_taps_mxu(h1s_ref, w2_ref, m2, 3) + bias[1:2, :], 0.0)
    h2 = h2.reshape(bblk, S1 // 2, LANES)[:, 0:L2, :]        # drop junk rows >= L2
    p2 = jnp.concatenate(
        [jnp.zeros((bblk, 1, LANES), f32), h2,
         jnp.zeros((bblk, S2 - 1 - L2, LANES), f32)], axis=1)
    h2s_ref[0:bblk * S2, :] = p2.reshape(bblk * S2, LANES)
    h2s_ref[pl.ds(bblk * S2, SLOP), :] = jnp.zeros((SLOP, LANES), f32)

    # ---------------- conv3 (k=3, s=2, p=1): MXU, M = bblk*S2/2 -------------
    m3 = bblk * (S2 // 2)
    h3 = jnp.maximum(conv_taps_mxu(h2s_ref, w3_ref, m3, 3) + bias[2:3, :], 0.0)
    h3s_ref[...] = h3                                        # (bblk*S3, 128) dense

    # ------------- fc: logits = sum_l h3[:, l, :] @ Wf_l + bf ---------------
    acc = None
    for l in range(L3):                                      # static unroll
        a = h3s_ref[pl.ds(l, bblk, S3), :].astype(bf16)      # (bblk, 128)
        part = jnp.dot(a, wf_ref[l], preferred_element_type=f32)
        acc = part if acc is None else acc + part
    o_ref[...] = acc + bias[3:4, :]


# ---------------------------------------------------------------------------
# Parameter init (PyTorch layout) + one-time prep into kernel layout
# ---------------------------------------------------------------------------
def _uniform(key, shape, bound):
    return jax.random.uniform(key, shape, jnp.float32, -bound, bound)


def init_params(key, num_classes=10, channels=25, linear_in=125):
    # deterministic init mimicking PyTorch's default (uniform +/- 1/sqrt(fan_in))
    ks = jax.random.split(key, 8)

    def conv_init(kw, kb, cout, cin, ksz):
        bound = 1.0 / float(np.sqrt(cin * ksz))
        return _uniform(kw, (cout, cin, ksz), bound), _uniform(kb, (cout,), bound)

    w1, b1 = conv_init(ks[0], ks[1], channels, 1, 5)
    w2, b2 = conv_init(ks[2], ks[3], channels, channels, 3)
    w3, b3 = conv_init(ks[4], ks[5], channels, channels, 3)
    bound = 1.0 / float(np.sqrt(linear_in))
    wf = _uniform(ks[6], (num_classes, linear_in), bound)
    bf = _uniform(ks[7], (num_classes,), bound)
    return dict(w1=w1, b1=b1, w2=w2, b2=b2, w3=w3, b3=b3, wf=wf, bf=bf)


def prepare_params(params):
    """Pre-transpose + zero-pad weights once into lane-dense tap form.
    conv2/conv3/fc tap matrices are stored in bf16 (MXU-native); conv1 taps and
    all biases stay f32 (VPU math)."""
    C = params["w1"].shape[0]

    # conv1 taps as VPU rows: w1p[k, c] = w1[c, 0, k]; rows padded 5 -> 8.
    w1p = jnp.transpose(params["w1"][:, 0, :], (1, 0))                 # (5, C)
    w1p = jnp.pad(w1p, ((0, 3), (0, LANES - C))).astype(jnp.float32)   # (8, 128)

    def conv_taps(w):            # (Cout, Cin, K) -> (K, 128, 128) bf16 [k, cin, cout]
        wt = jnp.transpose(w, (2, 1, 0))
        wt = jnp.pad(wt, ((0, 0), (0, LANES - wt.shape[1]),
                          (0, LANES - wt.shape[2])))
        return wt.astype(jnp.bfloat16)

    w2t = conv_taps(params["w2"])                                      # (3,128,128)
    w3t = conv_taps(params["w3"])                                      # (3,128,128)

    # fc columns are indexed c*L3 + l (PyTorch NCW flatten); fold that order
    # into per-position tap matrices Wf_l[c, o] so the kernel never reorders lanes.
    nc, lin = params["wf"].shape
    l3 = lin // C
    wft = jnp.transpose(params["wf"].reshape(nc, C, l3), (2, 1, 0))    # (L3, C, nc)
    wft = jnp.pad(wft, ((0, 0), (0, LANES - C),
                        (0, LANES - nc))).astype(jnp.bfloat16)

    def pad_b(b):
        return jnp.pad(b, (0, LANES - b.shape[0]))

    biases = jnp.stack([pad_b(params["b1"]), pad_b(params["b2"]),
                        pad_b(params["b3"]), pad_b(params["bf"])], axis=0)
    biases = jnp.pad(biases, ((0, 4), (0, 0))).astype(jnp.float32)     # (8, 128)
    return dict(w1p=w1p, w2t=w2t, w3t=w3t, wft=wft, biases=biases)


# ---------------------------------------------------------------------------
# Forward wrapper: one pallas_call, grid over batch blocks
# ---------------------------------------------------------------------------
def conv_base_forward(prep, x, num_classes=10):
    L = int(x.shape[-1])
    xb = x.reshape(-1, L).astype(jnp.float32)          # mirrors x.view(-1, 1, L)
    B = xb.shape[0]

    L1 = _conv_out_len(L, 5, 2, 1)
    L2 = _conv_out_len(L1, 3, 2, 1)
    L3 = _conv_out_len(L2, 3, 2, 1)
    assert prep["wft"].shape[0] == L3, "input length inconsistent with fc weight"

    # Per-sample storage rows (even; halves are multiples of 8 so all reshapes
    # between (bblk, S, 128) and (bblk*S, 128) are layout no-ops).
    S0 = _ru8(max(L + 2, 2 * L1 + 4))
    S1 = 2 * _ru8(max(L2, (L1 + 3) // 2))
    S2 = 2 * _ru8(max(L3, (L2 + 3) // 2))
    S3 = S2 // 2

    # Batch block: >=8 (sublane-dense output), <=32 (VMEM headroom on v7x), and
    # >=2 grid steps whenever the batch allows it (v7x megacore).
    bblk = max(8, min(32, _ru8(pl.cdiv(B, 2))))
    nblk = pl.cdiv(B, bblk)
    b_pad = nblk * bblk

    # Padded, lane-broadcast input: per-sample rows [0, x, 0..]; the value is
    # replicated over all 128 lanes so conv1 is a pure VPU broadcast-FMA.
    p0 = jnp.pad(xb, ((0, b_pad - B), (1, S0 - 1 - L)))
    xin = jnp.broadcast_to(p0[:, :, None], (b_pad, S0, LANES))
    xin = xin.reshape(b_pad * S0, LANES)

    kernel = functools.partial(_convbase_kernel, bblk=bblk, L1=L1, L2=L2, L3=L3,
                               S0=S0, S1=S1, S2=S2, S3=S3)
    out = pl.pallas_call(
        kernel,
        out_shape=jax.ShapeDtypeStruct((b_pad, LANES), jnp.float32),
        grid=(nblk,),
        in_specs=[
            pl.BlockSpec((bblk * S0, LANES), lambda i: (i, 0)),        # input block
            pl.BlockSpec(prep["w1p"].shape, lambda i: (0, 0)),         # resident
            pl.BlockSpec(prep["w2t"].shape, lambda i: (0, 0, 0)),      # resident
            pl.BlockSpec(prep["w3t"].shape, lambda i: (0, 0, 0)),      # resident
            pl.BlockSpec(prep["wft"].shape, lambda i: (0, 0, 0)),      # resident
            pl.BlockSpec(prep["biases"].shape, lambda i: (0, 0)),      # resident
        ],
        out_specs=pl.BlockSpec((bblk, LANES), lambda i: (i, 0)),
        scratch_shapes=[
            pltpu.VMEM((bblk * S1 + SLOP, LANES), jnp.float32),  # padded h1 block
            pltpu.VMEM((bblk * S2 + SLOP, LANES), jnp.float32),  # padded h2 block
            pltpu.VMEM((bblk * S3, LANES), jnp.float32),         # h3 block
        ],
        compiler_params=pltpu.CompilerParams(
            dimension_semantics=("parallel",)),     # batch blocks -> megacore on v7x
    )(xin, prep["w1p"], prep["w2t"], prep["w3t"], prep["wft"], prep["biases"])

    return out[:B, :num_classes]


# ---------------------------------------------------------------------------
# Pure-JAX reference (correctness cross-check)
# ---------------------------------------------------------------------------
def _conv1d_ref(x, w, b, stride, padding):
    y = jax.lax.conv_general_dilated(
        x, w, window_strides=(stride,), padding=[(padding, padding)],
        dimension_numbers=("NCH", "OIH", "NCH"))
    return y + b[None, :, None]


def conv_base_ref(params, x):
    L = x.shape[-1]
    x = x.reshape(-1, 1, L)
    h1 = jnp.maximum(_conv1d_ref(x, params["w1"], params["b1"], 2, 1), 0.0)
    h2 = jnp.maximum(_conv1d_ref(h1, params["w2"], params["b2"], 2, 1), 0.0)
    h3 = jnp.maximum(_conv1d_ref(h2, params["w3"], params["b3"], 2, 1), 0.0)
    flat = h3.reshape(h3.shape[0], -1)
    return flat @ params["wf"].T + params["bf"][None, :]


if __name__ == "__main__":
    key = jax.random.PRNGKey(0)
    kp, kx = jax.random.split(key)
    params = init_params(kp, num_classes=10, channels=25, linear_in=125)
    prep = prepare_params(params)          # one-time weight re-layout + bf16 cast

    # MNIST-1D: sequence length 40 => conv stack yields 25 ch x 5 = 125 = linear_in
    x = jax.random.normal(kx, (2, 40), jnp.float32)

    fwd = jax.jit(conv_base_forward, static_argnames=("num_classes",))
    out = jax.block_until_ready(fwd(prep, x, num_classes=10))
    assert out.shape == (2, 10)

    ref = conv_base_ref(params, x)
    np.testing.assert_allclose(np.asarray(out), np.asarray(ref),
                               rtol=3e-2, atol=3e-2)   # bf16 matmul tolerance
    print("KERNEL_OK")
</pallas_src>

<mosaic_0001>
module attributes {stable_mosaic.version = 11 : i64} {
  func.func @_convbase_kernel(%arg0: i32, %arg1: memref<384x128xf32, #tpu.memory_space<vmem>>, %arg2: memref<8x128xf32, #tpu.memory_space<vmem>>, %arg3: memref<3x128x128xbf16, #tpu.memory_space<vmem>>, %arg4: memref<3x128x128xbf16, #tpu.memory_space<vmem>>, %arg5: memref<5x128x128xbf16, #tpu.memory_space<vmem>>, %arg6: memref<8x128xf32, #tpu.memory_space<vmem>>, %arg7: memref<8x128xf32, #tpu.memory_space<vmem>>, %arg8: memref<264x128xf32, #tpu.memory_space<vmem>>, %arg9: memref<136x128xf32, #tpu.memory_space<vmem>>, %arg10: memref<64x128xf32, #tpu.memory_space<vmem>>) attributes {dimension_semantics = [#tpu.dimension_semantics<parallel>], iteration_bounds = array<i64: 1>, scalar_prefetch = 0 : i64, scratch_operands = 3 : i64, tpu.core_type = #tpu.core_type<tc>, window_params = [{transform_indices = @transform_0, window_bounds = array<i64: 384, 128>}, {pipeline_mode = #tpu.pipeline_mode<synchronous>, transform_indices = @transform_1, window_bounds = array<i64: 8, 128>}, {pipeline_mode = #tpu.pipeline_mode<synchronous>, transform_indices = @transform_2, window_bounds = array<i64: 3, 128, 128>}, {pipeline_mode = #tpu.pipeline_mode<synchronous>, transform_indices = @transform_3, window_bounds = array<i64: 3, 128, 128>}, {pipeline_mode = #tpu.pipeline_mode<synchronous>, transform_indices = @transform_4, window_bounds = array<i64: 5, 128, 128>}, {pipeline_mode = #tpu.pipeline_mode<synchronous>, transform_indices = @transform_5, window_bounds = array<i64: 8, 128>}, {transform_indices = @transform_6, window_bounds = array<i64: 8, 128>}]} {
    %c0 = arith.constant 0 : index
    %c0_0 = arith.constant 0 : index
    %0 = vector.load %arg6[%c0, %c0_0] : memref<8x128xf32, #tpu.memory_space<vmem>>, vector<8x128xf32>
    %c0_1 = arith.constant 0 : index
    %c0_2 = arith.constant 0 : index
    %1 = vector.load %arg2[%c0_1, %c0_2] : memref<8x128xf32, #tpu.memory_space<vmem>>, vector<8x128xf32>
    %c0_3 = arith.constant 0 : index
    %c0_4 = arith.constant 0 : index
    %2 = tpu.strided_load %arg1[%c0_3, %c0_4] {strides = array<i32: 2, 1>} : memref<384x128xf32, #tpu.memory_space<vmem>>, vector<192x128xf32>
    %3 = vector.shape_cast %2 : vector<192x128xf32> to vector<8x24x128xf32>
    %c1 = arith.constant 1 : index
    %c0_5 = arith.constant 0 : index
    %4 = tpu.strided_load %arg1[%c1, %c0_5] {strides = array<i32: 2, 1>} : memref<384x128xf32, #tpu.memory_space<vmem>>, vector<192x128xf32>
    %5 = vector.shape_cast %4 : vector<192x128xf32> to vector<8x24x128xf32>
    %6 = vector.extract_strided_slice %3 {offsets = [0, 0, 0], sizes = [8, 19, 128], strides = [1, 1, 1]} : vector<8x24x128xf32> to vector<8x19x128xf32>
    %7 = vector.extract_strided_slice %5 {offsets = [0, 0, 0], sizes = [8, 19, 128], strides = [1, 1, 1]} : vector<8x24x128xf32> to vector<8x19x128xf32>
    %8 = vector.extract_strided_slice %3 {offsets = [0, 1, 0], sizes = [8, 19, 128], strides = [1, 1, 1]} : vector<8x24x128xf32> to vector<8x19x128xf32>
    %9 = vector.extract_strided_slice %5 {offsets = [0, 1, 0], sizes = [8, 19, 128], strides = [1, 1, 1]} : vector<8x24x128xf32> to vector<8x19x128xf32>
    %10 = vector.extract_strided_slice %3 {offsets = [0, 2, 0], sizes = [8, 19, 128], strides = [1, 1, 1]} : vector<8x24x128xf32> to vector<8x19x128xf32>
    %11 = vector.extract_strided_slice %1 {offsets = [0, 0], sizes = [1, 128], strides = [1, 1]} : vector<8x128xf32> to vector<1x128xf32>
    %12 = vector.shape_cast %11 : vector<1x128xf32> to vector<1x1x128xf32>
    %13 = vector.broadcast %12 : vector<1x1x128xf32> to vector<8x19x128xf32>
    %14 = arith.mulf %6, %13 : vector<8x19x128xf32>
    %15 = vector.extract_strided_slice %1 {offsets = [1, 0], sizes = [1, 128], strides = [1, 1]} : vector<8x128xf32> to vector<1x128xf32>
    %16 = vector.shape_cast %15 : vector<1x128xf32> to vector<1x1x128xf32>
    %17 = vector.broadcast %16 : vector<1x1x128xf32> to vector<8x19x128xf32>
    %18 = arith.mulf %7, %17 : vector<8x19x128xf32>
    %19 = arith.addf %14, %18 : vector<8x19x128xf32>
    %20 = vector.extract_strided_slice %1 {offsets = [2, 0], sizes = [1, 128], strides = [1, 1]} : vector<8x128xf32> to vector<1x128xf32>
    %21 = vector.shape_cast %20 : vector<1x128xf32> to vector<1x1x128xf32>
    %22 = vector.broadcast %21 : vector<1x1x128xf32> to vector<8x19x128xf32>
    %23 = arith.mulf %8, %22 : vector<8x19x128xf32>
    %24 = arith.addf %19, %23 : vector<8x19x128xf32>
    %25 = vector.extract_strided_slice %1 {offsets = [3, 0], sizes = [1, 128], strides = [1, 1]} : vector<8x128xf32> to vector<1x128xf32>
    %26 = vector.shape_cast %25 : vector<1x128xf32> to vector<1x1x128xf32>
    %27 = vector.broadcast %26 : vector<1x1x128xf32> to vector<8x19x128xf32>
    %28 = arith.mulf %9, %27 : vector<8x19x128xf32>
    %29 = arith.addf %24, %28 : vector<8x19x128xf32>
    %30 = vector.extract_strided_slice %1 {offsets = [4, 0], sizes = [1, 128], strides = [1, 1]} : vector<8x128xf32> to vector<1x128xf32>
    %31 = vector.shape_cast %30 : vector<1x128xf32> to vector<1x1x128xf32>
    %32 = vector.broadcast %31 : vector<1x1x128xf32> to vector<8x19x128xf32>
    %33 = arith.mulf %10, %32 : vector<8x19x128xf32>
    %34 = arith.addf %29, %33 : vector<8x19x128xf32>
    %35 = vector.extract_strided_slice %0 {offsets = [0, 0], sizes = [1, 128], strides = [1, 1]} : vector<8x128xf32> to vector<1x128xf32>
    %36 = vector.shape_cast %35 : vector<1x128xf32> to vector<1x1x128xf32>
    %37 = vector.broadcast %36 : vector<1x1x128xf32> to vector<8x19x128xf32>
    %38 = arith.addf %34, %37 : vector<8x19x128xf32>
    %cst = arith.constant 0.000000e+00 : f32
    %39 = vector.broadcast %cst : f32 to vector<8x19x128xf32>
    %40 = arith.maximumf %38, %39 : vector<8x19x128xf32>
    %cst_6 = arith.constant 0.000000e+00 : f32
    %41 = vector.broadcast %cst_6 : f32 to vector<8x1x128xf32>
    %cst_7 = arith.constant 0.000000e+00 : f32
    %42 = vector.broadcast %cst_7 : f32 to vector<8x12x128xf32>
    %43 = tpu.concatenate %41, %40, %42 in 1 : vector<8x1x128xf32>, vector<8x19x128xf32>, vector<8x12x128xf32> -> vector<8x32x128xf32>
    %44 = vector.shape_cast %43 : vector<8x32x128xf32> to vector<256x128xf32>
    %c0_8 = arith.constant 0 : index
    %c0_9 = arith.constant 0 : index
    %45 = vector.load %arg8[%c0_8, %c0_9] : memref<264x128xf32, #tpu.memory_space<vmem>>, vector<256x128xf32>
    tpu.vector_store %arg8[%c0_8, %c0_9], %44 {strides = array<i32>} : memref<264x128xf32, #tpu.memory_space<vmem>>, vector<256x128xf32>,
    %cst_10 = arith.constant 0.000000e+00 : f32
    %46 = vector.broadcast %cst_10 : f32 to vector<8x128xf32>
    %c256 = arith.constant 256 : index
    %c0_11 = arith.constant 0 : index
    %47 = vector.load %arg8[%c256, %c0_11] : memref<264x128xf32, #tpu.memory_space<vmem>>, vector<8x128xf32>
    tpu.vector_store %arg8[%c256, %c0_11], %46 {strides = array<i32>} : memref<264x128xf32, #tpu.memory_space<vmem>>, vector<8x128xf32>,
    %c0_12 = arith.constant 0 : index
    %c0_13 = arith.constant 0 : index
    %48 = tpu.strided_load %arg8[%c0_12, %c0_13] {strides = array<i32: 2, 1>} : memref<264x128xf32, #tpu.memory_space<vmem>>, vector<128x128xf32>
    %49 = arith.truncf %48 : vector<128x128xf32> to vector<128x128xbf16>
    %c0_14 = arith.constant 0 : index
    %c0_15 = arith.constant 0 : index
    %c0_16 = arith.constant 0 : index
    %50 = vector.load %arg3[%c0_14, %c0_15, %c0_16] : memref<3x128x128xbf16, #tpu.memory_space<vmem>>, vector<1x128x128xbf16>
    %51 = vector.shape_cast %50 : vector<1x128x128xbf16> to vector<128x128xbf16>
    %cst_17 = arith.constant dense<0.000000e+00> : vector<128x128xf32>
    %52 = tpu.matmul %49, %51, %cst_17 {dimension_numbers = #tpu.dot_dimension_numbers<[1], [0], [0], [1], [0, 0, 1, 1], [], []>} : vector<128x128xbf16>, vector<128x128xbf16>, vector<128x128xf32> -> vector<128x128xf32>
    %c1_18 = arith.constant 1 : index
    %c0_19 = arith.constant 0 : index
    %53 = tpu.strided_load %arg8[%c1_18, %c0_19] {strides = array<i32: 2, 1>} : memref<264x128xf32, #tpu.memory_space<vmem>>, vector<128x128xf32>
    %54 = arith.truncf %53 : vector<128x128xf32> to vector<128x128xbf16>
    %c1_20 = arith.constant 1 : index
    %c0_21 = arith.constant 0 : index
    %c0_22 = arith.constant 0 : index
    %55 = vector.load %arg3[%c1_20, %c0_21, %c0_22] : memref<3x128x128xbf16, #tpu.memory_space<vmem>>, vector<1x128x128xbf16>
    %56 = vector.shape_cast %55 : vector<1x128x128xbf16> to vector<128x128xbf16>
    %cst_23 = arith.constant dense<0.000000e+00> : vector<128x128xf32>
    %57 = tpu.matmul %54, %56, %cst_23 {dimension_numbers = #tpu.dot_dimension_numbers<[1], [0], [0], [1], [0, 0, 1, 1], [], []>} : vector<128x128xbf16>, vector<128x128xbf16>, vector<128x128xf32> -> vector<128x128xf32>
    %58 = arith.addf %52, %57 : vector<128x128xf32>
    %c2 = arith.constant 2 : index
    %c0_24 = arith.constant 0 : index
    %59 = tpu.strided_load %arg8[%c2, %c0_24] {strides = array<i32: 2, 1>} : memref<264x128xf32, #tpu.memory_space<vmem>>, vector<128x128xf32>
    %60 = arith.truncf %59 : vector<128x128xf32> to vector<128x128xbf16>
    %c2_25 = arith.constant 2 : index
    %c0_26 = arith.constant 0 : index
    %c0_27 = arith.constant 0 : index
    %61 = vector.load %arg3[%c2_25, %c0_26, %c0_27] : memref<3x128x128xbf16, #tpu.memory_space<vmem>>, vector<1x128x128xbf16>
    %62 = vector.shape_cast %61 : vector<1x128x128xbf16> to vector<128x128xbf16>
    %cst_28 = arith.constant dense<0.000000e+00> : vector<128x128xf32>
    %63 = tpu.matmul %60, %62, %cst_28 {dimension_numbers = #tpu.dot_dimension_numbers<[1], [0], [0], [1], [0, 0, 1, 1], [], []>} : vector<128x128xbf16>, vector<128x128xbf16>, vector<128x128xf32> -> vector<128x128xf32>
    %64 = arith.addf %58, %63 : vector<128x128xf32>
    %65 = vector.extract_strided_slice %0 {offsets = [1, 0], sizes = [1, 128], strides = [1, 1]} : vector<8x128xf32> to vector<1x128xf32>
    %66 = vector.broadcast %65 : vector<1x128xf32> to vector<128x128xf32>
    %67 = arith.addf %64, %66 : vector<128x128xf32>
    %cst_29 = arith.constant 0.000000e+00 : f32
    %68 = vector.broadcast %cst_29 : f32 to vector<128x128xf32>
    %69 = arith.maximumf %67, %68 : vector<128x128xf32>
    %70 = vector.shape_cast %69 : vector<128x128xf32> to vector<8x16x128xf32>
    %71 = vector.extract_strided_slice %70 {offsets = [0, 0, 0], sizes = [8, 10, 128], strides = [1, 1, 1]} : vector<8x16x128xf32> to vector<8x10x128xf32>
    %cst_30 = arith.constant 0.000000e+00 : f32
    %72 = vector.broadcast %cst_30 : f32 to vector<8x1x128xf32>
    %cst_31 = arith.constant 0.000000e+00 : f32
    %73 = vector.broadcast %cst_31 : f32 to vector<8x5x128xf32>
    %74 = tpu.concatenate %72, %71, %73 in 1 : vector<8x1x128xf32>, vector<8x10x128xf32>, vector<8x5x128xf32> -> vector<8x16x128xf32>
    %75 = vector.shape_cast %74 : vector<8x16x128xf32> to vector<128x128xf32>
    %c0_32 = arith.constant 0 : index
    %c0_33 = arith.constant 0 : index
    %76 = vector.load %arg9[%c0_32, %c0_33] : memref<136x128xf32, #tpu.memory_space<vmem>>, vector<128x128xf32>
    tpu.vector_store %arg9[%c0_32, %c0_33], %75 {strides = array<i32>} : memref<136x128xf32, #tpu.memory_space<vmem>>, vector<128x128xf32>,
    %cst_34 = arith.constant 0.000000e+00 : f32
    %77 = vector.broadcast %cst_34 : f32 to vector<8x128xf32>
    %c128 = arith.constant 128 : index
    %c0_35 = arith.constant 0 : index
    %78 = vector.load %arg9[%c128, %c0_35] : memref<136x128xf32, #tpu.memory_space<vmem>>, vector<8x128xf32>
    tpu.vector_store %arg9[%c128, %c0_35], %77 {strides = array<i32>} : memref<136x128xf32, #tpu.memory_space<vmem>>, vector<8x128xf32>,
    %c0_36 = arith.constant 0 : index
    %c0_37 = arith.constant 0 : index
    %79 = tpu.strided_load %arg9[%c0_36, %c0_37] {strides = array<i32: 2, 1>} : memref<136x128xf32, #tpu.memory_space<vmem>>, vector<64x128xf32>
    %80 = arith.truncf %79 : vector<64x128xf32> to vector<64x128xbf16>
    %c0_38 = arith.constant 0 : index
    %c0_39 = arith.constant 0 : index
    %c0_40 = arith.constant 0 : index
    %81 = vector.load %arg4[%c0_38, %c0_39, %c0_40] : memref<3x128x128xbf16, #tpu.memory_space<vmem>>, vector<1x128x128xbf16>
    %82 = vector.shape_cast %81 : vector<1x128x128xbf16> to vector<128x128xbf16>
    %cst_41 = arith.constant dense<0.000000e+00> : vector<64x128xf32>
    %83 = tpu.matmul %80, %82, %cst_41 {dimension_numbers = #tpu.dot_dimension_numbers<[1], [0], [0], [1], [0, 0, 1, 1], [], []>} : vector<64x128xbf16>, vector<128x128xbf16>, vector<64x128xf32> -> vector<64x128xf32>
    %c1_42 = arith.constant 1 : index
    %c0_43 = arith.constant 0 : index
    %84 = tpu.strided_load %arg9[%c1_42, %c0_43] {strides = array<i32: 2, 1>} : memref<136x128xf32, #tpu.memory_space<vmem>>, vector<64x128xf32>
    %85 = arith.truncf %84 : vector<64x128xf32> to vector<64x128xbf16>
    %c1_44 = arith.constant 1 : index
    %c0_45 = arith.constant 0 : index
    %c0_46 = arith.constant 0 : index
    %86 = vector.load %arg4[%c1_44, %c0_45, %c0_46] : memref<3x128x128xbf16, #tpu.memory_space<vmem>>, vector<1x128x128xbf16>
    %87 = vector.shape_cast %86 : vector<1x128x128xbf16> to vector<128x128xbf16>
    %cst_47 = arith.constant dense<0.000000e+00> : vector<64x128xf32>
    %88 = tpu.matmul %85, %87, %cst_47 {dimension_numbers = #tpu.dot_dimension_numbers<[1], [0], [0], [1], [0, 0, 1, 1], [], []>} : vector<64x128xbf16>, vector<128x128xbf16>, vector<64x128xf32> -> vector<64x128xf32>
    %89 = arith.addf %83, %88 : vector<64x128xf32>
    %c2_48 = arith.constant 2 : index
    %c0_49 = arith.constant 0 : index
    %90 = tpu.strided_load %arg9[%c2_48, %c0_49] {strides = array<i32: 2, 1>} : memref<136x128xf32, #tpu.memory_space<vmem>>, vector<64x128xf32>
    %91 = arith.truncf %90 : vector<64x128xf32> to vector<64x128xbf16>
    %c2_50 = arith.constant 2 : index
    %c0_51 = arith.constant 0 : index
    %c0_52 = arith.constant 0 : index
    %92 = vector.load %arg4[%c2_50, %c0_51, %c0_52] : memref<3x128x128xbf16, #tpu.memory_space<vmem>>, vector<1x128x128xbf16>
    %93 = vector.shape_cast %92 : vector<1x128x128xbf16> to vector<128x128xbf16>
    %cst_53 = arith.constant dense<0.000000e+00> : vector<64x128xf32>
    %94 = tpu.matmul %91, %93, %cst_53 {dimension_numbers = #tpu.dot_dimension_numbers<[1], [0], [0], [1], [0, 0, 1, 1], [], []>} : vector<64x128xbf16>, vector<128x128xbf16>, vector<64x128xf32> -> vector<64x128xf32>
    %95 = arith.addf %89, %94 : vector<64x128xf32>
    %96 = vector.extract_strided_slice %0 {offsets = [2, 0], sizes = [1, 128], strides = [1, 1]} : vector<8x128xf32> to vector<1x128xf32>
    %97 = vector.broadcast %96 : vector<1x128xf32> to vector<64x128xf32>
    %98 = arith.addf %95, %97 : vector<64x128xf32>
    %cst_54 = arith.constant 0.000000e+00 : f32
    %99 = vector.broadcast %cst_54 : f32 to vector<64x128xf32>
    %100 = arith.maximumf %98, %99 : vector<64x128xf32>
    %c0_55 = arith.constant 0 : index
    %c0_56 = arith.constant 0 : index
    %101 = vector.load %arg10[%c0_55, %c0_56] : memref<64x128xf32, #tpu.memory_space<vmem>>, vector<64x128xf32>
    tpu.vector_store %arg10[%c0_55, %c0_56], %100 {strides = array<i32>} : memref<64x128xf32, #tpu.memory_space<vmem>>, vector<64x128xf32>,
    %c0_57 = arith.constant 0 : index
    %c0_58 = arith.constant 0 : index
    %102 = tpu.strided_load %arg10[%c0_57, %c0_58] {strides = array<i32: 8, 1>} : memref<64x128xf32, #tpu.memory_space<vmem>>, vector<8x128xf32>
    %103 = arith.truncf %102 : vector<8x128xf32> to vector<8x128xbf16>
    %c0_59 = arith.constant 0 : index
    %c0_60 = arith.constant 0 : index
    %c0_61 = arith.constant 0 : index
    %104 = vector.load %arg5[%c0_59, %c0_60, %c0_61] : memref<5x128x128xbf16, #tpu.memory_space<vmem>>, vector<1x128x128xbf16>
    %105 = vector.shape_cast %104 : vector<1x128x128xbf16> to vector<128x128xbf16>
    %cst_62 = arith.constant dense<0.000000e+00> : vector<8x128xf32>
    %106 = tpu.matmul %103, %105, %cst_62 {dimension_numbers = #tpu.dot_dimension_numbers<[1], [0], [0], [1], [0, 0, 1, 1], [], []>} : vector<8x128xbf16>, vector<128x128xbf16>, vector<8x128xf32> -> vector<8x128xf32>
    %c1_63 = arith.constant 1 : index
    %c0_64 = arith.constant 0 : index
    %107 = tpu.strided_load %arg10[%c1_63, %c0_64] {strides = array<i32: 8, 1>} : memref<64x128xf32, #tpu.memory_space<vmem>>, vector<8x128xf32>
    %108 = arith.truncf %107 : vector<8x128xf32> to vector<8x128xbf16>
    %c1_65 = arith.constant 1 : index
    %c0_66 = arith.constant 0 : index
    %c0_67 = arith.constant 0 : index
    %109 = vector.load %arg5[%c1_65, %c0_66, %c0_67] : memref<5x128x128xbf16, #tpu.memory_space<vmem>>, vector<1x128x128xbf16>
    %110 = vector.shape_cast %109 : vector<1x128x128xbf16> to vector<128x128xbf16>
    %cst_68 = arith.constant dense<0.000000e+00> : vector<8x128xf32>
    %111 = tpu.matmul %108, %110, %cst_68 {dimension_numbers = #tpu.dot_dimension_numbers<[1], [0], [0], [1], [0, 0, 1, 1], [], []>} : vector<8x128xbf16>, vector<128x128xbf16>, vector<8x128xf32> -> vector<8x128xf32>
    %112 = arith.addf %106, %111 : vector<8x128xf32>
    %c2_69 = arith.constant 2 : index
    %c0_70 = arith.constant 0 : index
    %113 = tpu.strided_load %arg10[%c2_69, %c0_70] {strides = array<i32: 8, 1>} : memref<64x128xf32, #tpu.memory_space<vmem>>, vector<8x128xf32>
    %114 = arith.truncf %113 : vector<8x128xf32> to vector<8x128xbf16>
    %c2_71 = arith.constant 2 : index
    %c0_72 = arith.constant 0 : index
    %c0_73 = arith.constant 0 : index
    %115 = vector.load %arg5[%c2_71, %c0_72, %c0_73] : memref<5x128x128xbf16, #tpu.memory_space<vmem>>, vector<1x128x128xbf16>
    %116 = vector.shape_cast %115 : vector<1x128x128xbf16> to vector<128x128xbf16>
    %cst_74 = arith.constant dense<0.000000e+00> : vector<8x128xf32>
    %117 = tpu.matmul %114, %116, %cst_74 {dimension_numbers = #tpu.dot_dimension_numbers<[1], [0], [0], [1], [0, 0, 1, 1], [], []>} : vector<8x128xbf16>, vector<128x128xbf16>, vector<8x128xf32> -> vector<8x128xf32>
    %118 = arith.addf %112, %117 : vector<8x128xf32>
    %c3 = arith.constant 3 : index
    %c0_75 = arith.constant 0 : index
    %119 = tpu.strided_load %arg10[%c3, %c0_75] {strides = array<i32: 8, 1>} : memref<64x128xf32, #tpu.memory_space<vmem>>, vector<8x128xf32>
    %120 = arith.truncf %119 : vector<8x128xf32> to vector<8x128xbf16>
    %c3_76 = arith.constant 3 : index
    %c0_77 = arith.constant 0 : index
    %c0_78 = arith.constant 0 : index
    %121 = vector.load %arg5[%c3_76, %c0_77, %c0_78] : memref<5x128x128xbf16, #tpu.memory_space<vmem>>, vector<1x128x128xbf16>
    %122 = vector.shape_cast %121 : vector<1x128x128xbf16> to vector<128x128xbf16>
    %cst_79 = arith.constant dense<0.000000e+00> : vector<8x128xf32>
    %123 = tpu.matmul %120, %122, %cst_79 {dimension_numbers = #tpu.dot_dimension_numbers<[1], [0], [0], [1], [0, 0, 1, 1], [], []>} : vector<8x128xbf16>, vector<128x128xbf16>, vector<8x128xf32> -> vector<8x128xf32>
    %124 = arith.addf %118, %123 : vector<8x128xf32>
    %c4 = arith.constant 4 : index
    %c0_80 = arith.constant 0 : index
    %125 = tpu.strided_load %arg10[%c4, %c0_80] {strides = array<i32: 8, 1>} : memref<64x128xf32, #tpu.memory_space<vmem>>, vector<8x128xf32>
    %126 = arith.truncf %125 : vector<8x128xf32> to vector<8x128xbf16>
    %c4_81 = arith.constant 4 : index
    %c0_82 = arith.constant 0 : index
    %c0_83 = arith.constant 0 : index
    %127 = vector.load %arg5[%c4_81, %c0_82, %c0_83] : memref<5x128x128xbf16, #tpu.memory_space<vmem>>, vector<1x128x128xbf16>
    %128 = vector.shape_cast %127 : vector<1x128x128xbf16> to vector<128x128xbf16>
    %cst_84 = arith.constant dense<0.000000e+00> : vector<8x128xf32>
    %129 = tpu.matmul %126, %128, %cst_84 {dimension_numbers = #tpu.dot_dimension_numbers<[1], [0], [0], [1], [0, 0, 1, 1], [], []>} : vector<8x128xbf16>, vector<128x128xbf16>, vector<8x128xf32> -> vector<8x128xf32>
    %130 = arith.addf %124, %129 : vector<8x128xf32>
    %131 = vector.extract_strided_slice %0 {offsets = [3, 0], sizes = [1, 128], strides = [1, 1]} : vector<8x128xf32> to vector<1x128xf32>
    %132 = vector.broadcast %131 : vector<1x128xf32> to vector<8x128xf32>
    %133 = arith.addf %130, %132 : vector<8x128xf32>
    %c0_85 = arith.constant 0 : index
    %c0_86 = arith.constant 0 : index
    %134 = vector.load %arg7[%c0_85, %c0_86] : memref<8x128xf32, #tpu.memory_space<vmem>>, vector<8x128xf32>
    tpu.vector_store %arg7[%c0_85, %c0_86], %133 {strides = array<i32>} : memref<8x128xf32, #tpu.memory_space<vmem>>, vector<8x128xf32>,
    return
  }
  func.func @transform_0(%arg0: i32) -> (i32, i32) {
    %c0_i32 = arith.constant 0 : i32
    %c0_i32_0 = arith.constant 0 : i32
    return %arg0, %c0_i32 : i32, i32
  }
  func.func @transform_1(%arg0: i32) -> (i32, i32) {
    %c0_i32 = arith.constant 0 : i32
    %c0_i32_0 = arith.constant 0 : i32
    %c0_i32_1 = arith.constant 0 : i32
    return %c0_i32, %c0_i32_0 : i32, i32
  }
  func.func @transform_2(%arg0: i32) -> (i32, i32, i32) {
    %c0_i32 = arith.constant 0 : i32
    %c0_i32_0 = arith.constant 0 : i32
    %c0_i32_1 = arith.constant 0 : i32
    %c0_i32_2 = arith.constant 0 : i32
    return %c0_i32, %c0_i32_0, %c0_i32_1 : i32, i32, i32
  }
  func.func @transform_3(%arg0: i32) -> (i32, i32, i32) {
    %c0_i32 = arith.constant 0 : i32
    %c0_i32_0 = arith.constant 0 : i32
    %c0_i32_1 = arith.constant 0 : i32
    %c0_i32_2 = arith.constant 0 : i32
    return %c0_i32, %c0_i32_0, %c0_i32_1 : i32, i32, i32
  }
  func.func @transform_4(%arg0: i32) -> (i32, i32, i32) {
    %c0_i32 = arith.constant 0 : i32
    %c0_i32_0 = arith.constant 0 : i32
    %c0_i32_1 = arith.constant 0 : i32
    %c0_i32_2 = arith.constant 0 : i32
    return %c0_i32, %c0_i32_0, %c0_i32_1 : i32, i32, i32
  }
  func.func @transform_5(%arg0: i32) -> (i32, i32) {
    %c0_i32 = arith.constant 0 : i32
    %c0_i32_0 = arith.constant 0 : i32
    %c0_i32_1 = arith.constant 0 : i32
    return %c0_i32, %c0_i32_0 : i32, i32
  }
  func.func @transform_6(%arg0: i32) -> (i32, i32) {
    %c0_i32 = arith.constant 0 : i32
    %c0_i32_0 = arith.constant 0 : i32
    return %arg0, %c0_i32 : i32, i32
  }
}

</mosaic_0001>

<llo_original>
// kernel: conv_base_forward.1
$region0: #{conv_base_forward.1}
  #allocation0 [shape = 'u32[]', space=smem, size = 0x4, offset = 0x4, fixed_abs, tag = 'smem constant byte address 0x4 - core index']
  #allocation1 [shape = 'u32[144,128]{1,0:T(1,128)}', space=vmem, size = 0x12000, scoped, tag = 'internal scratch']
  #allocation2 [shape = 'f32[264,128]{1,0:T(8,128)}', space=vmem, size = 0x21000, scoped, tag = 'scratch operand']
  #allocation3 [shape = 'f32[136,128]{1,0:T(8,128)}', space=vmem, size = 0x11000, scoped, tag = 'scratch operand']
  #allocation4 [shape = 'f32[64,128]{1,0:T(8,128)}', space=vmem, size = 0x8000, scoped, tag = 'scratch operand']
  %s0 = inlined_call_operand.vmem [shape: f32[384,128], index: 0, kind: input, shape index: {}]
  %s1 = inlined_call_operand.vmem [shape: f32[8,128], index: 1, kind: input, shape index: {}]
  %s2 = inlined_call_operand.hbm [shape: bf16[3,128,128], index: 2, kind: input, shape index: {}]
  %s3 = inlined_call_operand.hbm [shape: bf16[3,128,128], index: 3, kind: input, shape index: {}]
  %s4 = inlined_call_operand.vmem [shape: bf16[5,128,128], index: 4, kind: input, shape index: {}]
  %s5 = inlined_call_operand.vmem [shape: f32[8,128], index: 5, kind: input, shape index: {}]
  %s6 = inlined_call_operand.vmem [shape: f32[8,128], index: 6, kind: output, shape index: {}]
  %s7 = sld [smem:[#allocation0]]
  $region42: #{conv_base_forward.1} parent=0
    _
  %s9 = ssub.s32 1, %s7
  %s10 = scalar_select 0, %s9, %s7
  $region1: #{conv_base_forward.1} parent=0
    #allocation5 [shape = 'u8[98304]{0}', space=vmem, size = 0x18000, scoped, tag = 'input window, operand 2, single buffered']
    #allocation6 [shape = 's32[1]{0}', space=sflag, size = 0x4, scoped, tag = 'scoped memory for conv_base_forward.1']
    #allocation7 [shape = 'u8[98304]{0}', space=vmem, size = 0x18000, scoped, tag = 'input window, operand 3, single buffered']
    #allocation8 [shape = 's32[1]{0}', space=sflag, size = 0x4, scoped, tag = 'scoped memory for conv_base_forward.1']
    %11 = vsyncpa [#allocation6], 0
    %12 = vsyncpa [#allocation8], 0
    // Predicated region
    $region2: #{conv_base_forward.1} parent=1 // pred_check
      _
    $region3: #{conv_base_forward.1} parent=1 // pred_check_branch
      %14 = sbr.rel (0) target = $region5
    $region4: #{conv_base_forward.1} parent=1 // pred_region
      _
    $region5: #{conv_base_forward.1} parent=1 // pred_fallthru
      _
    // Predicated region
    $region6: #{conv_base_forward.1} parent=1 // pred_check
      _
    $region7: #{conv_base_forward.1} parent=1 // pred_check_branch
      %16 = sbr.rel (0) target = $region9
    $region8: #{conv_base_forward.1} parent=1 // pred_region
      _
    $region9: #{conv_base_forward.1} parent=1 // pred_fallthru
      _
    // Predicated region
    $region10: #{conv_base_forward.1} parent=1 // pred_check
      _
    $region11: #{conv_base_forward.1} parent=1 // pred_check_branch
      %18 = sbr.rel (0) target = $region13
    $region12: #{conv_base_forward.1} parent=1 // pred_region
      %s20 = ssub.s32 3072, 3072
      %21 = vsyncadd [#allocation6], %s20
      %s22 = sshll.u32 [#allocation5], 4
      %s23 = int_to_ptr.vmem [resolvable:$true] %s22
      %28 = dma.hbm_to_vmem [thread:$0]  %s2, 3072, %s23, [#allocation6], 64, 64, 4
    $region13: #{conv_base_forward.1} parent=1 // pred_fallthru
      _
    // Predicated region
    $region14: #{conv_base_forward.1} parent=1 // pred_check
      _
    $region15: #{conv_base_forward.1} parent=1 // pred_check_branch
      %30 = sbr.rel (0) target = $region17
    $region16: #{conv_base_forward.1} parent=1 // pred_region
      %s32 = ssub.s32 3072, 3072
      %33 = vsyncadd [#allocation8], %s32
      %s34 = sshll.u32 [#allocation7], 4
      %s35 = int_to_ptr.vmem [resolvable:$true] %s34
      %40 = dma.hbm_to_vmem [thread:$0]  %s3, 3072, %s35, [#allocation8], 64, 64, 4
    $region17: #{conv_base_forward.1} parent=1 // pred_fallthru
      _
    // Predicated region
    $region18: #{conv_base_forward.1} parent=1 // pred_check
      _
    $region19: #{conv_base_forward.1} parent=1 // pred_check_branch
      %42 = sbr.rel (0) target = $region21
    $region20: #{conv_base_forward.1} parent=1 // pred_region
      _
    $region21: #{conv_base_forward.1} parent=1 // pred_fallthru
      _
    // Predicated region
    $region22: #{conv_base_forward.1} parent=1 // pred_check
      _
    $region23: #{conv_base_forward.1} parent=1 // pred_check_branch
      %44 = sbr.rel (0) target = $region25
    $region24: #{conv_base_forward.1} parent=1 // pred_region
      _
    $region25: #{conv_base_forward.1} parent=1 // pred_fallthru
      _
    // Predicated region
    $region26: #{conv_base_forward.1} parent=1 // pred_check
      _
    $region27: #{conv_base_forward.1} parent=1 // pred_check_branch
      %46 = sbr.rel (0) target = $region29
    $region28: #{conv_base_forward.1} parent=1 // pred_region
      %47 = dma.done [#allocation6], 3072
    $region29: #{conv_base_forward.1} parent=1 // pred_fallthru
      _
    // Predicated region
    $region30: #{conv_base_forward.1} parent=1 // pred_check
      _
    $region31: #{conv_base_forward.1} parent=1 // pred_check_branch
      %49 = sbr.rel (0) target = $region33
    $region32: #{conv_base_forward.1} parent=1 // pred_region
      %50 = dma.done [#allocation8], 3072
    $region33: #{conv_base_forward.1} parent=1 // pred_fallthru
      _
    %v52 = vld [vmem:[%s5] sm:$0xff]
    %v53 = vld [vmem:[%s1] sm:$0xff]
    %v54 = vld [vmem:[%s0] ss:$2 sm:$0xff]
    %s55 = scalar_lea.vmem %s0, 16
    %v56 = vld [vmem:[%s55] ss:$2 sm:$0xff]
    %s57 = scalar_lea.vmem %s0, 32
    %v58 = vld [vmem:[%s57] ss:$2 sm:$0xff]
    %s59 = scalar_lea.vmem %s0, 48
    %v60 = vld [vmem:[%s59] ss:$2 sm:$0xff]
    %s61 = scalar_lea.vmem %s0, 64
    %v62 = vld [vmem:[%s61] ss:$2 sm:$0xff]
    %s63 = scalar_lea.vmem %s0, 80
    %v64 = vld [vmem:[%s63] ss:$2 sm:$0xff]
    %s65 = scalar_lea.vmem %s0, 96
    %v66 = vld [vmem:[%s65] ss:$2 sm:$0xff]
    %s67 = scalar_lea.vmem %s0, 112
    %v68 = vld [vmem:[%s67] ss:$2 sm:$0xff]
    %s69 = scalar_lea.vmem %s0, 128
    %v70 = vld [vmem:[%s69] ss:$2 sm:$0xff]
    %s71 = scalar_lea.vmem %s0, 144
    %v72 = vld [vmem:[%s71] ss:$2 sm:$0xff]
    %s73 = scalar_lea.vmem %s0, 160
    %v74 = vld [vmem:[%s73] ss:$2 sm:$0xff]
    %s75 = scalar_lea.vmem %s0, 176
    %v76 = vld [vmem:[%s75] ss:$2 sm:$0xff]
    %s77 = scalar_lea.vmem %s0, 192
    %v78 = vld [vmem:[%s77] ss:$2 sm:$0xff]
    %s79 = scalar_lea.vmem %s0, 208
    %v80 = vld [vmem:[%s79] ss:$2 sm:$0xff]
    %s81 = scalar_lea.vmem %s0, 224
    %v82 = vld [vmem:[%s81] ss:$2 sm:$0xff]
    %s83 = scalar_lea.vmem %s0, 240
    %v84 = vld [vmem:[%s83] ss:$2 sm:$0xff]
    %s85 = scalar_lea.vmem %s0, 256
    %v86 = vld [vmem:[%s85] ss:$2 sm:$0xff]
    %s87 = scalar_lea.vmem %s0, 272
    %v88 = vld [vmem:[%s87] ss:$2 sm:$0xff]
    %s89 = scalar_lea.vmem %s0, 288
    %v90 = vld [vmem:[%s89] ss:$2 sm:$0xff]
    %s91 = scalar_lea.vmem %s0, 304
    %v92 = vld [vmem:[%s91] ss:$2 sm:$0xff]
    %s93 = scalar_lea.vmem %s0, 320
    %v94 = vld [vmem:[%s93] ss:$2 sm:$0xff]
    %s95 = scalar_lea.vmem %s0, 336
    %v96 = vld [vmem:[%s95] ss:$2 sm:$0xff]
    %s97 = scalar_lea.vmem %s0, 352
    %v98 = vld [vmem:[%s97] ss:$2 sm:$0xff]
    %s99 = scalar_lea.vmem %s0, 368
    %v100 = vld [vmem:[%s99] ss:$2 sm:$0xff]
    %s101 = scalar_lea.vmem %s0, 1
    %v102 = vld [vmem:[%s101] ss:$2 sm:$0xff]
    %s103 = scalar_lea.vmem %s0, 17
    %v104 = vld [vmem:[%s103] ss:$2 sm:$0xff]
    %s105 = scalar_lea.vmem %s0, 33
    %v106 = vld [vmem:[%s105] ss:$2 sm:$0xff]
    %s107 = scalar_lea.vmem %s0, 49
    %v108 = vld [vmem:[%s107] ss:$2 sm:$0xff]
    %s109 = scalar_lea.vmem %s0, 65
    %v110 = vld [vmem:[%s109] ss:$2 sm:$0xff]
    %s111 = scalar_lea.vmem %s0, 81
    %v112 = vld [vmem:[%s111] ss:$2 sm:$0xff]
    %s113 = scalar_lea.vmem %s0, 97
    %v114 = vld [vmem:[%s113] ss:$2 sm:$0xff]
    %s115 = scalar_lea.vmem %s0, 113
    %v116 = vld [vmem:[%s115] ss:$2 sm:$0xff]
    %s117 = scalar_lea.vmem %s0, 129
    %v118 = vld [vmem:[%s117] ss:$2 sm:$0xff]
    %s119 = scalar_lea.vmem %s0, 145
    %v120 = vld [vmem:[%s119] ss:$2 sm:$0xff]
    %s121 = scalar_lea.vmem %s0, 161
    %v122 = vld [vmem:[%s121] ss:$2 sm:$0xff]
    %s123 = scalar_lea.vmem %s0, 177
    %v124 = vld [vmem:[%s123] ss:$2 sm:$0xff]
    %s125 = scalar_lea.vmem %s0, 193
    %v126 = vld [vmem:[%s125] ss:$2 sm:$0xff]
    %s127 = scalar_lea.vmem %s0, 209
    %v128 = vld [vmem:[%s127] ss:$2 sm:$0xff]
    %s129 = scalar_lea.vmem %s0, 225
    %v130 = vld [vmem:[%s129] ss:$2 sm:$0xff]
    %s131 = scalar_lea.vmem %s0, 241
    %v132 = vld [vmem:[%s131] ss:$2 sm:$0xff]
    %s133 = scalar_lea.vmem %s0, 257
    %v134 = vld [vmem:[%s133] ss:$2 sm:$0xff]
    %s135 = scalar_lea.vmem %s0, 273
    %v136 = vld [vmem:[%s135] ss:$2 sm:$0xff]
    %s137 = scalar_lea.vmem %s0, 289
    %v138 = vld [vmem:[%s137] ss:$2 sm:$0xff]
    %s139 = scalar_lea.vmem %s0, 305
    %v140 = vld [vmem:[%s139] ss:$2 sm:$0xff]
    %s141 = scalar_lea.vmem %s0, 321
    %v142 = vld [vmem:[%s141] ss:$2 sm:$0xff]
    %s143 = scalar_lea.vmem %s0, 337
    %v144 = vld [vmem:[%s143] ss:$2 sm:$0xff]
    %s145 = scalar_lea.vmem %s0, 353
    %v146 = vld [vmem:[%s145] ss:$2 sm:$0xff]
    %s147 = scalar_lea.vmem %s0, 369
    %v148 = vld [vmem:[%s147] ss:$2 sm:$0xff]
    %v149 = vlaneseq
    %v150 = vshrl.u32 %v149, 7
    %v151 = vsub.s32 0, %v150
    %v152 = vrot.slane %v53, %v151
    %v153 = vmul.f32 %v54, %v152
    %v154 = vmul.f32 %v56, %v152
    %v155 = vmul.f32 %v58, %v152
    %v156 = vmul.f32 %v60, %v152
    %v157 = vmul.f32 %v62, %v152
    %v158 = vmul.f32 %v64, %v152
    %v159 = vmul.f32 %v66, %v152
    %v160 = vmul.f32 %v68, %v152
    %v161 = vmul.f32 %v70, %v152
    %v162 = vmul.f32 %v72, %v152
    %v163 = vmul.f32 %v74, %v152
    %v164 = vmul.f32 %v76, %v152
    %v165 = vmul.f32 %v78, %v152
    %v166 = vmul.f32 %v80, %v152
    %v167 = vmul.f32 %v82, %v152
    %v168 = vmul.f32 %v84, %v152
    %v169 = vmul.f32 %v86, %v152
    %v170 = vmul.f32 %v88, %v152
    %v171 = vmul.f32 %v90, %v152
    %v172 = vmul.f32 %v92, %v152
    %v173 = vmul.f32 %v94, %v152
    %v174 = vmul.f32 %v96, %v152
    %v175 = vmul.f32 %v98, %v152
    %v176 = vmul.f32 %v100, %v152
    %v177 = vlaneseq
    %v178 = vshrl.u32 %v177, 7
    %v179 = vsub.s32 1, %v178
    %v180 = vrot.slane %v53, %v179
    %v181 = vmul.f32 %v102, %v180
    %v182 = vmul.f32 %v104, %v180
    %v183 = vmul.f32 %v106, %v180
    %v184 = vmul.f32 %v108, %v180
    %v185 = vmul.f32 %v110, %v180
    %v186 = vmul.f32 %v112, %v180
    %v187 = vmul.f32 %v114, %v180
    %v188 = vmul.f32 %v116, %v180
    %v189 = vmul.f32 %v118, %v180
    %v190 = vmul.f32 %v120, %v180
    %v191 = vmul.f32 %v122, %v180
    %v192 = vmul.f32 %v124, %v180
    %v193 = vmul.f32 %v126, %v180
    %v194 = vmul.f32 %v128, %v180
    %v195 = vmul.f32 %v130, %v180
    %v196 = vmul.f32 %v132, %v180
    %v197 = vmul.f32 %v134, %v180
    %v198 = vmul.f32 %v136, %v180
    %v199 = vmul.f32 %v138, %v180
    %v200 = vmul.f32 %v140, %v180
    %v201 = vmul.f32 %v142, %v180
    %v202 = vmul.f32 %v144, %v180
    %v203 = vmul.f32 %v146, %v180
    %v204 = vmul.f32 %v148, %v180
    %v205 = vadd.f32 %v153, %v181
    %v206 = vadd.f32 %v154, %v182
    %v207 = vadd.f32 %v155, %v183
    %v208 = vadd.f32 %v156, %v184
    %v209 = vadd.f32 %v157, %v185
    %v210 = vadd.f32 %v158, %v186
    %v211 = vadd.f32 %v159, %v187
    %v212 = vadd.f32 %v160, %v188
    %v213 = vadd.f32 %v161, %v189
    %v214 = vadd.f32 %v162, %v190
    %v215 = vadd.f32 %v163, %v191
    %v216 = vadd.f32 %v164, %v192
    %v217 = vadd.f32 %v165, %v193
    %v218 = vadd.f32 %v166, %v194
    %v219 = vadd.f32 %v167, %v195
    %v220 = vadd.f32 %v168, %v196
    %v221 = vadd.f32 %v169, %v197
    %v222 = vadd.f32 %v170, %v198
    %v223 = vadd.f32 %v171, %v199
    %v224 = vadd.f32 %v172, %v200
    %v225 = vadd.f32 %v173, %v201
    %v226 = vadd.f32 %v174, %v202
    %v227 = vadd.f32 %v175, %v203
    %v228 = vadd.f32 %v176, %v204
    %v229 = vlaneseq
    %v230 = vshrl.u32 %v229, 7
    %v231 = vsub.s32 2, %v230
    %v232 = vrot.slane %v53, %v231
    %v233 = vmul.f32 %v54, %v232
    %v234 = vmul.f32 %v56, %v232
    %v235 = vmul.f32 %v58, %v232
    %v236 = vmul.f32 %v60, %v232
    %v237 = vmul.f32 %v62, %v232
    %v238 = vmul.f32 %v64, %v232
    %v239 = vmul.f32 %v66, %v232
    %v240 = vmul.f32 %v68, %v232
    %v241 = vmul.f32 %v70, %v232
    %v242 = vmul.f32 %v72, %v232
    %v243 = vmul.f32 %v74, %v232
    %v244 = vmul.f32 %v76, %v232
    %v245 = vmul.f32 %v78, %v232
    %v246 = vmul.f32 %v80, %v232
    %v247 = vmul.f32 %v82, %v232
    %v248 = vmul.f32 %v84, %v232
    %v249 = vmul.f32 %v86, %v232
    %v250 = vmul.f32 %v88, %v232
    %v251 = vmul.f32 %v90, %v232
    %v252 = vmul.f32 %v92, %v232
    %v253 = vmul.f32 %v94, %v232
    %v254 = vmul.f32 %v96, %v232
    %v255 = vmul.f32 %v98, %v232
    %v256 = vmul.f32 %v100, %v232
    %vm281 = vcmask 1046528
    %v282 = vrot.slane %v233, 1
    %v283 = vrot.slane %v234, 1
    %v284 = vsel %vm281, %v282, %v283
    %v285 = vrot.slane %v235, 1
    %v286 = vsel %vm281, %v283, %v285
    %v287 = vrot.slane %v236, 1
    %v288 = vrot.slane %v237, 1
    %v289 = vsel %vm281, %v287, %v288
    %v290 = vrot.slane %v238, 1
    %v291 = vsel %vm281, %v288, %v290
    %v292 = vrot.slane %v239, 1
    %v293 = vrot.slane %v240, 1
    %v294 = vsel %vm281, %v292, %v293
    %v295 = vrot.slane %v241, 1
    %v296 = vsel %vm281, %v293, %v295
    %v297 = vrot.slane %v242, 1
    %v298 = vrot.slane %v243, 1
    %v299 = vsel %vm281, %v297, %v298
    %v300 = vrot.slane %v244, 1
    %v301 = vsel %vm281, %v298, %v300
    %v302 = vrot.slane %v245, 1
    %v303 = vrot.slane %v246, 1
    %v304 = vsel %vm281, %v302, %v303
    %v305 = vrot.slane %v247, 1
    %v306 = vsel %vm281, %v303, %v305
    %v307 = vrot.slane %v248, 1
    %v308 = vrot.slane %v249, 1
    %v309 = vsel %vm281, %v307, %v308
    %v310 = vrot.slane %v250, 1
    %v311 = vsel %vm281, %v308, %v310
    %v312 = vrot.slane %v251, 1
    %v313 = vrot.slane %v252, 1
    %v314 = vsel %vm281, %v312, %v313
    %v315 = vrot.slane %v253, 1
    %v316 = vsel %vm281, %v313, %v315
    %v317 = vrot.slane %v254, 1
    %v318 = vrot.slane %v255, 1
    %v319 = vsel %vm281, %v317, %v318
    %v320 = vrot.slane %v256, 1
    %v321 = vsel %vm281, %v318, %v320
    %v346 = vadd.f32 %v205, %v284
    %v347 = vadd.f32 %v206, %v286
    %v348 = vadd.f32 %v207, %v285
    %v349 = vadd.f32 %v208, %v289
    %v350 = vadd.f32 %v209, %v291
    %v351 = vadd.f32 %v210, %v290
    %v352 = vadd.f32 %v211, %v294
    %v353 = vadd.f32 %v212, %v296
    %v354 = vadd.f32 %v213, %v295
    %v355 = vadd.f32 %v214, %v299
    %v356 = vadd.f32 %v215, %v301
    %v357 = vadd.f32 %v216, %v300
    %v358 = vadd.f32 %v217, %v304
    %v359 = vadd.f32 %v218, %v306
    %v360 = vadd.f32 %v219, %v305
    %v361 = vadd.f32 %v220, %v309
    %v362 = vadd.f32 %v221, %v311
    %v363 = vadd.f32 %v222, %v310
    %v364 = vadd.f32 %v223, %v314
    %v365 = vadd.f32 %v224, %v316
    %v366 = vadd.f32 %v225, %v315
    %v367 = vadd.f32 %v226, %v319
    %v368 = vadd.f32 %v227, %v321
    %v369 = vadd.f32 %v228, %v320
    %v370 = vlaneseq
    %v371 = vshrl.u32 %v370, 7
    %v372 = vsub.s32 3, %v371
    %v373 = vrot.slane %v53, %v372
    %v374 = vmul.f32 %v102, %v373
    %v375 = vmul.f32 %v104, %v373
    %v376 = vmul.f32 %v106, %v373
    %v377 = vmul.f32 %v108, %v373
    %v378 = vmul.f32 %v110, %v373
    %v379 = vmul.f32 %v112, %v373
    %v380 = vmul.f32 %v114, %v373
    %v381 = vmul.f32 %v116, %v373
    %v382 = vmul.f32 %v118, %v373
    %v383 = vmul.f32 %v120, %v373
    %v384 = vmul.f32 %v122, %v373
    %v385 = vmul.f32 %v124, %v373
    %v386 = vmul.f32 %v126, %v373
    %v387 = vmul.f32 %v128, %v373
    %v388 = vmul.f32 %v130, %v373
    %v389 = vmul.f32 %v132, %v373
    %v390 = vmul.f32 %v134, %v373
    %v391 = vmul.f32 %v136, %v373
    %v392 = vmul.f32 %v138, %v373
    %v393 = vmul.f32 %v140, %v373
    %v394 = vmul.f32 %v142, %v373
    %v395 = vmul.f32 %v144, %v373
    %v396 = vmul.f32 %v146, %v373
    %v397 = vmul.f32 %v148, %v373
    %v422 = vrot.slane %v374, 1
    %v423 = vrot.slane %v375, 1
    %v424 = vsel %vm281, %v422, %v423
    %v425 = vrot.slane %v376, 1
    %v426 = vsel %vm281, %v423, %v425
    %v427 = vrot.slane %v377, 1
    %v428 = vrot.slane %v378, 1
    %v429 = vsel %vm281, %v427, %v428
    %v430 = vrot.slane %v379, 1
    %v431 = vsel %vm281, %v428, %v430
    %v432 = vrot.slane %v380, 1
    %v433 = vrot.slane %v381, 1
    %v434 = vsel %vm281, %v432, %v433
    %v435 = vrot.slane %v382, 1
    %v436 = vsel %vm281, %v433, %v435
    %v437 = vrot.slane %v383, 1
    %v438 = vrot.slane %v384, 1
    %v439 = vsel %vm281, %v437, %v438
    %v440 = vrot.slane %v385, 1
    %v441 = vsel %vm281, %v438, %v440
    %v442 = vrot.slane %v386, 1
    %v443 = vrot.slane %v387, 1
    %v444 = vsel %vm281, %v442, %v443
    %v445 = vrot.slane %v388, 1
    %v446 = vsel %vm281, %v443, %v445
    %v447 = vrot.slane %v389, 1
    %v448 = vrot.slane %v390, 1
    %v449 = vsel %vm281, %v447, %v448
    %v450 = vrot.slane %v391, 1
    %v451 = vsel %vm281, %v448, %v450
    %v452 = vrot.slane %v392, 1
    %v453 = vrot.slane %v393, 1
    %v454 = vsel %vm281, %v452, %v453
    %v455 = vrot.slane %v394, 1
    %v456 = vsel %vm281, %v453, %v455
    %v457 = vrot.slane %v395, 1
    %v458 = vrot.slane %v396, 1
    %v459 = vsel %vm281, %v457, %v458
    %v460 = vrot.slane %v397, 1
    %v461 = vsel %vm281, %v458, %v460
    %v486 = vadd.f32 %v346, %v424
    %v487 = vadd.f32 %v347, %v426
    %v488 = vadd.f32 %v348, %v425
    %v489 = vadd.f32 %v349, %v429
    %v490 = vadd.f32 %v350, %v431
    %v491 = vadd.f32 %v351, %v430
    %v492 = vadd.f32 %v352, %v434
    %v493 = vadd.f32 %v353, %v436
    %v494 = vadd.f32 %v354, %v435
    %v495 = vadd.f32 %v355, %v439
    %v496 = vadd.f32 %v356, %v441
    %v497 = vadd.f32 %v357, %v440
    %v498 = vadd.f32 %v358, %v444
    %v499 = vadd.f32 %v359, %v446
    %v500 = vadd.f32 %v360, %v445
    %v501 = vadd.f32 %v361, %v449
    %v502 = vadd.f32 %v362, %v451
    %v503 = vadd.f32 %v363, %v450
    %v504 = vadd.f32 %v364, %v454
    %v505 = vadd.f32 %v365, %v456
    %v506 = vadd.f32 %v366, %v455
    %v507 = vadd.f32 %v367, %v459
    %v508 = vadd.f32 %v368, %v461
    %v509 = vadd.f32 %v369, %v460
    %v510 = vlaneseq
    %v511 = vshrl.u32 %v510, 7
    %v512 = vsub.s32 4, %v511
    %v513 = vrot.slane %v53, %v512
    %v514 = vmul.f32 %v54, %v513
    %v515 = vmul.f32 %v56, %v513
    %v516 = vmul.f32 %v58, %v513
    %v517 = vmul.f32 %v60, %v513
    %v518 = vmul.f32 %v62, %v513
    %v519 = vmul.f32 %v64, %v513
    %v520 = vmul.f32 %v66, %v513
    %v521 = vmul.f32 %v68, %v513
    %v522 = vmul.f32 %v70, %v513
    %v523 = vmul.f32 %v72, %v513
    %v524 = vmul.f32 %v74, %v513
    %v525 = vmul.f32 %v76, %v513
    %v526 = vmul.f32 %v78, %v513
    %v527 = vmul.f32 %v80, %v513
    %v528 = vmul.f32 %v82, %v513
    %v529 = vmul.f32 %v84, %v513
    %v530 = vmul.f32 %v86, %v513
    %v531 = vmul.f32 %v88, %v513
    %v532 = vmul.f32 %v90, %v513
    %v533 = vmul.f32 %v92, %v513
    %v534 = vmul.f32 %v94, %v513
    %v535 = vmul.f32 %v96, %v513
    %v536 = vmul.f32 %v98, %v513
    %v537 = vmul.f32 %v100, %v513
    %vm562 = vcmask 1045504
    %v563 = vrot.slane %v514, 2
    %v564 = vrot.slane %v515, 2
    %v565 = vsel %vm562, %v563, %v564
    %v566 = vrot.slane %v516, 2
    %v567 = vsel %vm562, %v564, %v566
    %v568 = vrot.slane %v517, 2
    %v569 = vrot.slane %v518, 2
    %v570 = vsel %vm562, %v568, %v569
    %v571 = vrot.slane %v519, 2
    %v572 = vsel %vm562, %v569, %v571
    %v573 = vrot.slane %v520, 2
    %v574 = vrot.slane %v521, 2
    %v575 = vsel %vm562, %v573, %v574
    %v576 = vrot.slane %v522, 2
    %v577 = vsel %vm562, %v574, %v576
    %v578 = vrot.slane %v523, 2
    %v579 = vrot.slane %v524, 2
    %v580 = vsel %vm562, %v578, %v579
    %v581 = vrot.slane %v525, 2
    %v582 = vsel %vm562, %v579, %v581
    %v583 = vrot.slane %v526, 2
    %v584 = vrot.slane %v527, 2
    %v585 = vsel %vm562, %v583, %v584
    %v586 = vrot.slane %v528, 2
    %v587 = vsel %vm562, %v584, %v586
    %v588 = vrot.slane %v529, 2
    %v589 = vrot.slane %v530, 2
    %v590 = vsel %vm562, %v588, %v589
    %v591 = vrot.slane %v531, 2
    %v592 = vsel %vm562, %v589, %v591
    %v593 = vrot.slane %v532, 2
    %v594 = vrot.slane %v533, 2
    %v595 = vsel %vm562, %v593, %v594
    %v596 = vrot.slane %v534, 2
    %v597 = vsel %vm562, %v594, %v596
    %v598 = vrot.slane %v535, 2
    %v599 = vrot.slane %v536, 2
    %v600 = vsel %vm562, %v598, %v599
    %v601 = vrot.slane %v537, 2
    %v602 = vsel %vm562, %v599, %v601
    %v627 = vadd.f32 %v486, %v565
    %v628 = vadd.f32 %v487, %v567
    %v629 = vadd.f32 %v488, %v566
    %v630 = vadd.f32 %v489, %v570
    %v631 = vadd.f32 %v490, %v572
    %v632 = vadd.f32 %v491, %v571
    %v633 = vadd.f32 %v492, %v575
    %v634 = vadd.f32 %v493, %v577
    %v635 = vadd.f32 %v494, %v576
    %v636 = vadd.f32 %v495, %v580
    %v637 = vadd.f32 %v496, %v582
    %v638 = vadd.f32 %v497, %v581
    %v639 = vadd.f32 %v498, %v585
    %v640 = vadd.f32 %v499, %v587
    %v641 = vadd.f32 %v500, %v586
    %v642 = vadd.f32 %v501, %v590
    %v643 = vadd.f32 %v502, %v592
    %v644 = vadd.f32 %v503, %v591
    %v645 = vadd.f32 %v504, %v595
    %v646 = vadd.f32 %v505, %v597
    %v647 = vadd.f32 %v506, %v596
    %v648 = vadd.f32 %v507, %v600
    %v649 = vadd.f32 %v508, %v602
    %v650 = vadd.f32 %v509, %v601
    %v651 = vlaneseq
    %v652 = vshrl.u32 %v651, 7
    %v653 = vsub.s32 0, %v652
    %v654 = vrot.slane %v52, %v653
    %v655 = vadd.f32 %v627, %v654
    %v656 = vadd.f32 %v628, %v654
    %v657 = vadd.f32 %v629, %v654
    %v658 = vadd.f32 %v630, %v654
    %v659 = vadd.f32 %v631, %v654
    %v660 = vadd.f32 %v632, %v654
    %v661 = vadd.f32 %v633, %v654
    %v662 = vadd.f32 %v634, %v654
    %v663 = vadd.f32 %v635, %v654
    %v664 = vadd.f32 %v636, %v654
    %v665 = vadd.f32 %v637, %v654
    %v666 = vadd.f32 %v638, %v654
    %v667 = vadd.f32 %v639, %v654
    %v668 = vadd.f32 %v640, %v654
    %v669 = vadd.f32 %v641, %v654
    %v670 = vadd.f32 %v642, %v654
    %v671 = vadd.f32 %v643, %v654
    %v672 = vadd.f32 %v644, %v654
    %v673 = vadd.f32 %v645, %v654
    %v674 = vadd.f32 %v646, %v654
    %v675 = vadd.f32 %v647, %v654
    %v676 = vadd.f32 %v648, %v654
    %v677 = vadd.f32 %v649, %v654
    %v678 = vadd.f32 %v650, %v654
    %v679 = vmax.f32 %v655, 0.0
    %v680 = vmax.f32 %v656, 0.0
    %v681 = vmax.f32 %v657, 0.0
    %v682 = vmax.f32 %v658, 0.0
    %v683 = vmax.f32 %v659, 0.0
    %v684 = vmax.f32 %v660, 0.0
    %v685 = vmax.f32 %v661, 0.0
    %v686 = vmax.f32 %v662, 0.0
    %v687 = vmax.f32 %v663, 0.0
    %v688 = vmax.f32 %v664, 0.0
    %v689 = vmax.f32 %v665, 0.0
    %v690 = vmax.f32 %v666, 0.0
    %v691 = vmax.f32 %v667, 0.0
    %v692 = vmax.f32 %v668, 0.0
    %v693 = vmax.f32 %v669, 0.0
    %v694 = vmax.f32 %v670, 0.0
    %v695 = vmax.f32 %v671, 0.0
    %v696 = vmax.f32 %v672, 0.0
    %v697 = vmax.f32 %v673, 0.0
    %v698 = vmax.f32 %v674, 0.0
    %v699 = vmax.f32 %v675, 0.0
    %v700 = vmax.f32 %v676, 0.0
    %v701 = vmax.f32 %v677, 0.0
    %v702 = vmax.f32 %v678, 0.0
    %vm727 = vcmask 1040384
    %v728 = vrot.slane %v679, 7
    %v729 = vrot.slane %v680, 7
    %v730 = vsel %vm727, %v728, %v729
    %v731 = vrot.slane %v681, 7
    %v732 = vsel %vm727, %v729, %v731
    %v733 = vrot.slane %v682, 7
    %v734 = vrot.slane %v683, 7
    %v735 = vsel %vm727, %v733, %v734
    %v736 = vrot.slane %v684, 7
    %v737 = vsel %vm727, %v734, %v736
    %v738 = vrot.slane %v685, 7
    %v739 = vrot.slane %v686, 7
    %v740 = vsel %vm727, %v738, %v739
    %v741 = vrot.slane %v687, 7
    %v742 = vsel %vm727, %v739, %v741
    %v743 = vrot.slane %v688, 7
    %v744 = vrot.slane %v689, 7
    %v745 = vsel %vm727, %v743, %v744
    %v746 = vrot.slane %v690, 7
    %v747 = vsel %vm727, %v744, %v746
    %v748 = vrot.slane %v691, 7
    %v749 = vrot.slane %v692, 7
    %v750 = vsel %vm727, %v748, %v749
    %v751 = vrot.slane %v693, 7
    %v752 = vsel %vm727, %v749, %v751
    %v753 = vrot.slane %v694, 7
    %v754 = vrot.slane %v695, 7
    %v755 = vsel %vm727, %v753, %v754
    %v756 = vrot.slane %v696, 7
    %v757 = vsel %vm727, %v754, %v756
    %v758 = vrot.slane %v697, 7
    %v759 = vrot.slane %v698, 7
    %v760 = vsel %vm727, %v758, %v759
    %v761 = vrot.slane %v699, 7
    %v762 = vsel %vm727, %v759, %v761
    %v763 = vrot.slane %v700, 7
    %v764 = vrot.slane %v701, 7
    %v765 = vsel %vm727, %v763, %v764
    %v766 = vrot.slane %v702, 7
    %v767 = vsel %vm727, %v764, %v766
    %v792 = vsel %vm727, 0.0, %v728
    %v793 = vsel %vm727, 0.0, %v733
    %v794 = vsel %vm727, 0.0, %v738
    %v795 = vsel %vm727, 0.0, %v743
    %v796 = vsel %vm727, 0.0, %v748
    %v797 = vsel %vm727, 0.0, %v753
    %v798 = vsel %vm727, 0.0, %v758
    %v799 = vsel %vm727, 0.0, %v763
    %vm800 = vcmask 1043456
    %v801 = vsel %vm800, %v732, 0.0
    %v802 = vsel %vm800, %v737, 0.0
    %v803 = vsel %vm800, %v742, 0.0
    %v804 = vsel %vm800, %v747, 0.0
    %v805 = vsel %vm800, %v752, 0.0
    %v806 = vsel %vm800, %v757, 0.0
    %v807 = vsel %vm800, %v762, 0.0
    %v808 = vsel %vm800, %v767, 0.0
    %809 = vst [vmem:[#allocation2] sm:$0xff] %v792
    %810 = vst [vmem:[#allocation2 + $0x8] sm:$0xff] %v730
    %811 = vst [vmem:[#allocation2 + $0x10] sm:$0xff] %v801
    %812 = vst [vmem:[#allocation2 + $0x18] sm:$0xff] 0.0
    %813 = vst [vmem:[#allocation2 + $0x20] sm:$0xff] %v793
    %814 = vst [vmem:[#allocation2 + $0x28] sm:$0xff] %v735
    %815 = vst [vmem:[#allocation2 + $0x30] sm:$0xff] %v802
    %816 = vst [vmem:[#allocation2 + $0x38] sm:$0xff] 0.0
    %817 = vst [vmem:[#allocation2 + $0x40] sm:$0xff] %v794
    %818 = vst [vmem:[#allocation2 + $0x48] sm:$0xff] %v740
    %819 = vst [vmem:[#allocation2 + $0x50] sm:$0xff] %v803
    %820 = vst [vmem:[#allocation2 + $0x58] sm:$0xff] 0.0
    %821 = vst [vmem:[#allocation2 + $0x60] sm:$0xff] %v795
    %822 = vst [vmem:[#allocation2 + $0x68] sm:$0xff] %v745
    %823 = vst [vmem:[#allocation2 + $0x70] sm:$0xff] %v804
    %824 = vst [vmem:[#allocation2 + $0x78] sm:$0xff] 0.0
    %825 = vst [vmem:[#allocation2 + $0x80] sm:$0xff] %v796
    %826 = vst [vmem:[#allocation2 + $0x88] sm:$0xff] %v750
    %827 = vst [vmem:[#allocation2 + $0x90] sm:$0xff] %v805
    %828 = vst [vmem:[#allocation2 + $0x98] sm:$0xff] 0.0
    %829 = vst [vmem:[#allocation2 + $0xa0] sm:$0xff] %v797
    %830 = vst [vmem:[#allocation2 + $0xa8] sm:$0xff] %v755
    %831 = vst [vmem:[#allocation2 + $0xb0] sm:$0xff] %v806
    %832 = vst [vmem:[#allocation2 + $0xb8] sm:$0xff] 0.0
    %833 = vst [vmem:[#allocation2 + $0xc0] sm:$0xff] %v798
    %834 = vst [vmem:[#allocation2 + $0xc8] sm:$0xff] %v760
    %835 = vst [vmem:[#allocation2 + $0xd0] sm:$0xff] %v807
    %836 = vst [vmem:[#allocation2 + $0xd8] sm:$0xff] 0.0
    %837 = vst [vmem:[#allocation2 + $0xe0] sm:$0xff] %v799
    %838 = vst [vmem:[#allocation2 + $0xe8] sm:$0xff] %v765
    %839 = vst [vmem:[#allocation2 + $0xf0] sm:$0xff] %v808
    %840 = vst [vmem:[#allocation2 + $0xf8] sm:$0xff] 0.0
    %841 = vst [vmem:[#allocation2 + $0x100] sm:$0xff] 0.0
    %v842 = vld [vmem:[#allocation2] ss:$2 sm:$0xff]
    %s843 = scalar_lea.vmem [#allocation2], 16
    %v844 = vld [vmem:[%s843] ss:$2 sm:$0xff]
    %s845 = scalar_lea.vmem [#allocation2], 32
    %v846 = vld [vmem:[%s845] ss:$2 sm:$0xff]
    %s847 = scalar_lea.vmem [#allocation2], 48
    %v848 = vld [vmem:[%s847] ss:$2 sm:$0xff]
    %s849 = scalar_lea.vmem [#allocation2], 64
    %v850 = vld [vmem:[%s849] ss:$2 sm:$0xff]
    %s851 = scalar_lea.vmem [#allocation2], 80
    %v852 = vld [vmem:[%s851] ss:$2 sm:$0xff]
    %s853 = scalar_lea.vmem [#allocation2], 96
    %v854 = vld [vmem:[%s853] ss:$2 sm:$0xff]
    %s855 = scalar_lea.vmem [#allocation2], 112
    %v856 = vld [vmem:[%s855] ss:$2 sm:$0xff]
    %s857 = scalar_lea.vmem [#allocation2], 128
    %v858 = vld [vmem:[%s857] ss:$2 sm:$0xff]
    %s859 = scalar_lea.vmem [#allocation2], 144
    %v860 = vld [vmem:[%s859] ss:$2 sm:$0xff]
    %s861 = scalar_lea.vmem [#allocation2], 160
    %v862 = vld [vmem:[%s861] ss:$2 sm:$0xff]
    %s863 = scalar_lea.vmem [#allocation2], 176
    %v864 = vld [vmem:[%s863] ss:$2 sm:$0xff]
    %s865 = scalar_lea.vmem [#allocation2], 192
    %v866 = vld [vmem:[%s865] ss:$2 sm:$0xff]
    %s867 = scalar_lea.vmem [#allocation2], 208
    %v868 = vld [vmem:[%s867] ss:$2 sm:$0xff]
    %s869 = scalar_lea.vmem [#allocation2], 224
    %v870 = vld [vmem:[%s869] ss:$2 sm:$0xff]
    %s871 = scalar_lea.vmem [#allocation2], 240
    %v872 = vld [vmem:[%s871] ss:$2 sm:$0xff]
    %v873 = vpack.c.bf16 %v844, %v842
    %v874 = vpack.c.bf16 %v848, %v846
    %v875 = vpack.c.bf16 %v852, %v850
    %v876 = vpack.c.bf16 %v856, %v854
    %v877 = vpack.c.bf16 %v860, %v858
    %v878 = vpack.c.bf16 %v864, %v862
    %v879 = vpack.c.bf16 %v868, %v866
    %v880 = vpack.c.bf16 %v872, %v870
    %v881 = vld [vmem:[#allocation5] sm:$0xf]
    %v882 = vld [vmem:[#allocation5 + $0x4] sm:$0xf]
    %v883 = vld [vmem:[#allocation5 + $0x8] sm:$0xf]
    %v884 = vld [vmem:[#allocation5 + $0xc] sm:$0xf]
    %v885 = vld [vmem:[#allocation5 + $0x10] sm:$0xf]
    %v886 = vld [vmem:[#allocation5 + $0x14] sm:$0xf]
    %v887 = vld [vmem:[#allocation5 + $0x18] sm:$0xf]
    %v888 = vld [vmem:[#allocation5 + $0x1c] sm:$0xf]
    %v889 = vld [vmem:[#allocation5 + $0x20] sm:$0xf]
    %v890 = vld [vmem:[#allocation5 + $0x24] sm:$0xf]
    %v891 = vld [vmem:[#allocation5 + $0x28] sm:$0xf]
    %v892 = vld [vmem:[#allocation5 + $0x2c] sm:$0xf]
    %v893 = vld [vmem:[#allocation5 + $0x30] sm:$0xf]
    %v894 = vld [vmem:[#allocation5 + $0x34] sm:$0xf]
    %v895 = vld [vmem:[#allocation5 + $0x38] sm:$0xf]
    %v896 = vld [vmem:[#allocation5 + $0x3c] sm:$0xf]
    %s897 = scalar_lea.vmem [#allocation2], 1
    %v898 = vld [vmem:[%s897] ss:$2 sm:$0xff]
    %s899 = scalar_lea.vmem [#allocation2], 17
    %v900 = vld [vmem:[%s899] ss:$2 sm:$0xff]
    %s901 = scalar_lea.vmem [#allocation2], 33
    %v902 = vld [vmem:[%s901] ss:$2 sm:$0xff]
    %s903 = scalar_lea.vmem [#allocation2], 49
    %v904 = vld [vmem:[%s903] ss:$2 sm:$0xff]
    %s905 = scalar_lea.vmem [#allocation2], 65
    %v906 = vld [vmem:[%s905] ss:$2 sm:$0xff]
    %s907 = scalar_lea.vmem [#allocation2], 81
    %v908 = vld [vmem:[%s907] ss:$2 sm:$0xff]
    %s909 = scalar_lea.vmem [#allocation2], 97
    %v910 = vld [vmem:[%s909] ss:$2 sm:$0xff]
    %s911 = scalar_lea.vmem [#allocation2], 113
    %v912 = vld [vmem:[%s911] ss:$2 sm:$0xff]
    %s913 = scalar_lea.vmem [#allocation2], 129
    %v914 = vld [vmem:[%s913] ss:$2 sm:$0xff]
    %s915 = scalar_lea.vmem [#allocation2], 145
    %v916 = vld [vmem:[%s915] ss:$2 sm:$0xff]
    %s917 = scalar_lea.vmem [#allocation2], 161
    %v918 = vld [vmem:[%s917] ss:$2 sm:$0xff]
    %s919 = scalar_lea.vmem [#allocation2], 177
    %v920 = vld [vmem:[%s919] ss:$2 sm:$0xff]
    %s921 = scalar_lea.vmem [#allocation2], 193
    %v922 = vld [vmem:[%s921] ss:$2 sm:$0xff]
    %s923 = scalar_lea.vmem [#allocation2], 209
    %v924 = vld [vmem:[%s923] ss:$2 sm:$0xff]
    %s925 = scalar_lea.vmem [#allocation2], 225
    %v926 = vld [vmem:[%s925] ss:$2 sm:$0xff]
    %s927 = scalar_lea.vmem [#allocation2], 241
    %v928 = vld [vmem:[%s927] ss:$2 sm:$0xff]
    %v929 = vpack.c.bf16 %v900, %v898
    %v930 = vpack.c.bf16 %v904, %v902
    %v931 = vpack.c.bf16 %v908, %v906
    %v932 = vpack.c.bf16 %v912, %v910
    %v933 = vpack.c.bf16 %v916, %v914
    %v934 = vpack.c.bf16 %v920, %v918
    %v935 = vpack.c.bf16 %v924, %v922
    %v936 = vpack.c.bf16 %v928, %v926
    %s937 = scalar_lea.vmem [#allocation5], 64
    %v938 = vld [vmem:[%s937] sm:$0xf]
    %v939 = vld [vmem:[%s937 + $0x4] sm:$0xf]
    %v940 = vld [vmem:[%s937 + $0x8] sm:$0xf]
    %v941 = vld [vmem:[%s937 + $0xc] sm:$0xf]
    %v942 = vld [vmem:[%s937 + $0x10] sm:$0xf]
    %v943 = vld [vmem:[%s937 + $0x14] sm:$0xf]
    %v944 = vld [vmem:[%s937 + $0x18] sm:$0xf]
    %v945 = vld [vmem:[%s937 + $0x1c] sm:$0xf]
    %v946 = vld [vmem:[%s937 + $0x20] sm:$0xf]
    %v947 = vld [vmem:[%s937 + $0x24] sm:$0xf]
    %v948 = vld [vmem:[%s937 + $0x28] sm:$0xf]
    %v949 = vld [vmem:[%s937 + $0x2c] sm:$0xf]
    %v950 = vld [vmem:[%s937 + $0x30] sm:$0xf]
    %v951 = vld [vmem:[%s937 + $0x34] sm:$0xf]
    %v952 = vld [vmem:[%s937 + $0x38] sm:$0xf]
    %v953 = vld [vmem:[%s937 + $0x3c] sm:$0xf]
    %v970 = vunpack.c.l.b16 %v938
    %v971 = vunpack.c.l.b16 %v939
    %v972 = vunpack.c.l.b16 %v940
    %v973 = vunpack.c.l.b16 %v941
    %v974 = vunpack.c.l.b16 %v942
    %v975 = vunpack.c.l.b16 %v943
    %v976 = vunpack.c.l.b16 %v944
    %v977 = vunpack.c.l.b16 %v945
    %v978 = vunpack.c.l.b16 %v946
    %v979 = vunpack.c.l.b16 %v947
    %v980 = vunpack.c.l.b16 %v948
    %v981 = vunpack.c.l.b16 %v949
    %v982 = vunpack.c.l.b16 %v950
    %v983 = vunpack.c.l.b16 %v951
    %v984 = vunpack.c.l.b16 %v952
    %v985 = vunpack.c.l.b16 %v953
    %v986 = vpack.c.b16 %v971, %v970
    %v987 = vpack.c.b16 %v973, %v972
    %v988 = vpack.c.b16 %v975, %v974
    %v989 = vpack.c.b16 %v977, %v976
    %v990 = vpack.c.b16 %v979, %v978
    %v991 = vpack.c.b16 %v981, %v980
    %v992 = vpack.c.b16 %v983, %v982
    %v993 = vpack.c.b16 %v985, %v984
    %1002 = vmatprep.subr.bf16.mxu0 0
    %1003 = vmatpush1.bf16.msra.mxu0 %v993
    %1004 = vmatprep.subr.bf16.mxu0 0
    %1005 = vmatpush1.bf16.msra.mxu0 %v992
    %1006 = vmatprep.subr.bf16.mxu0 0
    %1007 = vmatpush1.bf16.msra.mxu0 %v991
    %1008 = vmatprep.subr.bf16.mxu0 0
    %1009 = vmatpush1.bf16.msra.mxu0 %v990
    %1010 = vmatprep.subr.bf16.mxu0 0
    %1011 = vmatpush1.bf16.msra.mxu0 %v989
    %1012 = vmatprep.subr.bf16.mxu0 0
    %1013 = vmatpush1.bf16.msra.mxu0 %v988
    %1014 = vmatprep.subr.bf16.mxu0 0
    %1015 = vmatpush1.bf16.msra.mxu0 %v987
    %1016 = vmatprep.subr.bf16.mxu0 0
    %1017 = vmatpush1.bf16.msra.mxu0 %v986
    %1018 = vmatprep.subr.bf16.mxu0 0
    %1019 = vmatpush2.bf16.msra.mxu0 0
    %1020 = vmatprep.subr.bf16.mxu0 0
    %1021 = vmatpush2.bf16.msra.mxu0 0
    %1022 = vmatprep.subr.bf16.mxu0 0
    %1023 = vmatpush2.bf16.msra.mxu0 0
    %1024 = vmatprep.subr.bf16.mxu0 0
    %1025 = vmatpush2.bf16.msra.mxu0 0
    %1026 = vmatprep.subr.bf16.mxu0 0
    %1027 = vmatpush2.bf16.msra.mxu0 0
    %1028 = vmatprep.subr.bf16.mxu0 0
    %1029 = vmatpush2.bf16.msra.mxu0 0
    %1030 = vmatprep.subr.bf16.mxu0 0
    %1031 = vmatpush2.bf16.msra.mxu0 0
    %1032 = vmatprep.subr.bf16.mxu0 0
    %1033 = vmatpush2.bf16.msra.mxu0 0
    %1034 = vmatprep.mubr.bf16.mxu0 0
    %1035 = vmatmul.mubr.bf16.gmra.mxu0 %v929
    %v1036 = vpop.f32.mrf.mxu0
    %v1037 = vadd.f32 0.0, %v1036
    %v1038 = vpop.f32.mrf.mxu0
    %v1039 = vpop.f32.mrf.mxu0
    %v1040 = vadd.f32 0.0, %v1039
    %v1041 = vpop.f32.mrf.mxu0
    %1042 = vmatprep.mubr.bf16.mxu0 0
    %1043 = vmatmul.mubr.bf16.gmra.mxu0 %v930
    %v1044 = vpop.f32.mrf.mxu0
    %v1045 = vadd.f32 0.0, %v1044
    %v1046 = vpop.f32.mrf.mxu0
    %v1047 = vpop.f32.mrf.mxu0
    %v1048 = vadd.f32 0.0, %v1047
    %v1049 = vpop.f32.mrf.mxu0
    %1050 = vmatprep.mubr.bf16.mxu0 0
    %1051 = vmatmul.mubr.bf16.gmra.mxu0 %v931
    %v1052 = vpop.f32.mrf.mxu0
    %v1053 = vadd.f32 0.0, %v1052
    %v1054 = vpop.f32.mrf.mxu0
    %v1055 = vpop.f32.mrf.mxu0
    %v1056 = vadd.f32 0.0, %v1055
    %v1057 = vpop.f32.mrf.mxu0
    %1058 = vmatprep.mubr.bf16.mxu0 0
    %1059 = vmatmul.mubr.bf16.gmra.mxu0 %v932
    %v1060 = vpop.f32.mrf.mxu0
    %v1061 = vadd.f32 0.0, %v1060
    %v1062 = vpop.f32.mrf.mxu0
    %v1063 = vpop.f32.mrf.mxu0
    %v1064 = vadd.f32 0.0, %v1063
    %v1065 = vpop.f32.mrf.mxu0
    %1066 = vmatprep.mubr.bf16.mxu0 0
    %1067 = vmatmul.mubr.bf16.gmra.mxu0 %v933
    %v1068 = vpop.f32.mrf.mxu0
    %v1069 = vadd.f32 0.0, %v1068
    %v1070 = vpop.f32.mrf.mxu0
    %v1071 = vpop.f32.mrf.mxu0
    %v1072 = vadd.f32 0.0, %v1071
    %v1073 = vpop.f32.mrf.mxu0
    %1074 = vmatprep.mubr.bf16.mxu0 0
    %1075 = vmatmul.mubr.bf16.gmra.mxu0 %v934
    %v1076 = vpop.f32.mrf.mxu0
    %v1077 = vadd.f32 0.0, %v1076
    %v1078 = vpop.f32.mrf.mxu0
    %v1079 = vpop.f32.mrf.mxu0
    %v1080 = vadd.f32 0.0, %v1079
    %v1081 = vpop.f32.mrf.mxu0
    %1082 = vmatprep.mubr.bf16.mxu0 0
    %1083 = vmatmul.mubr.bf16.gmra.mxu0 %v935
    %v1084 = vpop.f32.mrf.mxu0
    %v1085 = vadd.f32 0.0, %v1084
    %v1086 = vpop.f32.mrf.mxu0
    %v1087 = vpop.f32.mrf.mxu0
    %v1088 = vadd.f32 0.0, %v1087
    %v1089 = vpop.f32.mrf.mxu0
    %1090 = vmatprep.mubr.bf16.mxu0 0
    %1091 = vmatmul.mubr.bf16.gmra.mxu0 %v936
    %v1092 = vpop.f32.mrf.mxu0
    %v1093 = vadd.f32 0.0, %v1092
    %v1094 = vpop.f32.mrf.mxu0
    %v1095 = vpop.f32.mrf.mxu0
    %v1096 = vadd.f32 0.0, %v1095
    %v1097 = vpop.f32.mrf.mxu0
    %1098 = vdwg.mxu0
    %v1115 = vunpack.c.l.b16 %v881
    %v1116 = vunpack.c.l.b16 %v882
    %v1117 = vunpack.c.l.b16 %v883
    %v1118 = vunpack.c.l.b16 %v884
    %v1119 = vunpack.c.l.b16 %v885
    %v1120 = vunpack.c.l.b16 %v886
    %v1121 = vunpack.c.l.b16 %v887
    %v1122 = vunpack.c.l.b16 %v888
    %v1123 = vunpack.c.l.b16 %v889
    %v1124 = vunpack.c.l.b16 %v890
    %v1125 = vunpack.c.l.b16 %v891
    %v1126 = vunpack.c.l.b16 %v892
    %v1127 = vunpack.c.l.b16 %v893
    %v1128 = vunpack.c.l.b16 %v894
    %v1129 = vunpack.c.l.b16 %v895
    %v1130 = vunpack.c.l.b16 %v896
    %v1131 = vpack.c.b16 %v1116, %v1115
    %v1132 = vpack.c.b16 %v1118, %v1117
    %v1133 = vpack.c.b16 %v1120, %v1119
    %v1134 = vpack.c.b16 %v1122, %v1121
    %v1135 = vpack.c.b16 %v1124, %v1123
    %v1136 = vpack.c.b16 %v1126, %v1125
    %v1137 = vpack.c.b16 %v1128, %v1127
    %v1138 = vpack.c.b16 %v1130, %v1129
    %1147 = vmatprep.subr.bf16.mxu0 0
    %1148 = vmatpush1.bf16.msra.mxu0 %v1138
    %1149 = vmatprep.subr.bf16.mxu0 0
    %1150 = vmatpush1.bf16.msra.mxu0 %v1137
    %1151 = vmatprep.subr.bf16.mxu0 0
    %1152 = vmatpush1.bf16.msra.mxu0 %v1136
    %1153 = vmatprep.subr.bf16.mxu0 0
    %1154 = vmatpush1.bf16.msra.mxu0 %v1135
    %1155 = vmatprep.subr.bf16.mxu0 0
    %1156 = vmatpush1.bf16.msra.mxu0 %v1134
    %1157 = vmatprep.subr.bf16.mxu0 0
    %1158 = vmatpush1.bf16.msra.mxu0 %v1133
    %1159 = vmatprep.subr.bf16.mxu0 0
    %1160 = vmatpush1.bf16.msra.mxu0 %v1132
    %1161 = vmatprep.subr.bf16.mxu0 0
    %1162 = vmatpush1.bf16.msra.mxu0 %v1131
    %1163 = vmatprep.subr.bf16.mxu0 0
    %1164 = vmatpush2.bf16.msra.mxu0 0
    %1165 = vmatprep.subr.bf16.mxu0 0
    %1166 = vmatpush2.bf16.msra.mxu0 0
    %1167 = vmatprep.subr.bf16.mxu0 0
    %1168 = vmatpush2.bf16.msra.mxu0 0
    %1169 = vmatprep.subr.bf16.mxu0 0
    %1170 = vmatpush2.bf16.msra.mxu0 0
    %1171 = vmatprep.subr.bf16.mxu0 0
    %1172 = vmatpush2.bf16.msra.mxu0 0
    %1173 = vmatprep.subr.bf16.mxu0 0
    %1174 = vmatpush2.bf16.msra.mxu0 0
    %1175 = vmatprep.subr.bf16.mxu0 0
    %1176 = vmatpush2.bf16.msra.mxu0 0
    %1177 = vmatprep.subr.bf16.mxu0 0
    %1178 = vmatpush2.bf16.msra.mxu0 0
    %1179 = vmatprep.mubr.bf16.mxu0 0
    %1180 = vmatmul.mubr.bf16.gmra.mxu0 %v873
    %v1181 = vpop.f32.mrf.mxu0
    %v1182 = vadd.f32 %v1037, %v1181
    %v1183 = vpop.f32.mrf.mxu0
    %v1184 = vpop.f32.mrf.mxu0
    %v1185 = vadd.f32 %v1040, %v1184
    %v1186 = vpop.f32.mrf.mxu0
    %1187 = vmatprep.mubr.bf16.mxu0 0
    %1188 = vmatmul.mubr.bf16.gmra.mxu0 %v874
    %v1189 = vpop.f32.mrf.mxu0
    %v1190 = vadd.f32 %v1045, %v1189
    %v1191 = vpop.f32.mrf.mxu0
    %v1192 = vpop.f32.mrf.mxu0
    %v1193 = vadd.f32 %v1048, %v1192
    %v1194 = vpop.f32.mrf.mxu0
    %1195 = vmatprep.mubr.bf16.mxu0 0
    %1196 = vmatmul.mubr.bf16.gmra.mxu0 %v875
    %v1197 = vpop.f32.mrf.mxu0
    %v1198 = vadd.f32 %v1053, %v1197
    %v1199 = vpop.f32.mrf.mxu0
    %v1200 = vpop.f32.mrf.mxu0
    %v1201 = vadd.f32 %v1056, %v1200
    %v1202 = vpop.f32.mrf.mxu0
    %1203 = vmatprep.mubr.bf16.mxu0 0
    %1204 = vmatmul.mubr.bf16.gmra.mxu0 %v876
    %v1205 = vpop.f32.mrf.mxu0
    %v1206 = vadd.f32 %v1061, %v1205
    %v1207 = vpop.f32.mrf.mxu0
    %v1208 = vpop.f32.mrf.mxu0
    %v1209 = vadd.f32 %v1064, %v1208
    %v1210 = vpop.f32.mrf.mxu0
    %1211 = vmatprep.mubr.bf16.mxu0 0
    %1212 = vmatmul.mubr.bf16.gmra.mxu0 %v877
    %v1213 = vpop.f32.mrf.mxu0
    %v1214 = vadd.f32 %v1069, %v1213
    %v1215 = vpop.f32.mrf.mxu0
    %v1216 = vpop.f32.mrf.mxu0
    %v1217 = vadd.f32 %v1072, %v1216
    %v1218 = vpop.f32.mrf.mxu0
    %1219 = vmatprep.mubr.bf16.mxu0 0
    %1220 = vmatmul.mubr.bf16.gmra.mxu0 %v878
    %v1221 = vpop.f32.mrf.mxu0
    %v1222 = vadd.f32 %v1077, %v1221
    %v1223 = vpop.f32.mrf.mxu0
    %v1224 = vpop.f32.mrf.mxu0
    %v1225 = vadd.f32 %v1080, %v1224
    %v1226 = vpop.f32.mrf.mxu0
    %1227 = vmatprep.mubr.bf16.mxu0 0
    %1228 = vmatmul.mubr.bf16.gmra.mxu0 %v879
    %v1229 = vpop.f32.mrf.mxu0
    %v1230 = vadd.f32 %v1085, %v1229
    %v1231 = vpop.f32.mrf.mxu0
    %v1232 = vpop.f32.mrf.mxu0
    %v1233 = vadd.f32 %v1088, %v1232
    %v1234 = vpop.f32.mrf.mxu0
    %1235 = vmatprep.mubr.bf16.mxu0 0
    %1236 = vmatmul.mubr.bf16.gmra.mxu0 %v880
    %v1237 = vpop.f32.mrf.mxu0
    %v1238 = vadd.f32 %v1093, %v1237
    %v1239 = vpop.f32.mrf.mxu0
    %v1240 = vpop.f32.mrf.mxu0
    %v1241 = vadd.f32 %v1096, %v1240
    %v1242 = vpop.f32.mrf.mxu0
    %1243 = vdwg.mxu0
    %s1244 = scalar_lea.vmem [#allocation2], 2
    %v1245 = vld [vmem:[%s1244] ss:$2 sm:$0xff]
    %s1246 = scalar_lea.vmem [#allocation2], 18
    %v1247 = vld [vmem:[%s1246] ss:$2 sm:$0xff]
    %s1248 = scalar_lea.vmem [#allocation2], 34
    %v1249 = vld [vmem:[%s1248] ss:$2 sm:$0xff]
    %s1250 = scalar_lea.vmem [#allocation2], 50
    %v1251 = vld [vmem:[%s1250] ss:$2 sm:$0xff]
    %s1252 = scalar_lea.vmem [#allocation2], 66
    %v1253 = vld [vmem:[%s1252] ss:$2 sm:$0xff]
    %s1254 = scalar_lea.vmem [#allocation2], 82
    %v1255 = vld [vmem:[%s1254] ss:$2 sm:$0xff]
    %s1256 = scalar_lea.vmem [#allocation2], 98
    %v1257 = vld [vmem:[%s1256] ss:$2 sm:$0xff]
    %s1258 = scalar_lea.vmem [#allocation2], 114
    %v1259 = vld [vmem:[%s1258] ss:$2 sm:$0xff]
    %s1260 = scalar_lea.vmem [#allocation2], 130
    %v1261 = vld [vmem:[%s1260] ss:$2 sm:$0xff]
    %s1262 = scalar_lea.vmem [#allocation2], 146
    %v1263 = vld [vmem:[%s1262] ss:$2 sm:$0xff]
    %s1264 = scalar_lea.vmem [#allocation2], 162
    %v1265 = vld [vmem:[%s1264] ss:$2 sm:$0xff]
    %s1266 = scalar_lea.vmem [#allocation2], 178
    %v1267 = vld [vmem:[%s1266] ss:$2 sm:$0xff]
    %s1268 = scalar_lea.vmem [#allocation2], 194
    %v1269 = vld [vmem:[%s1268] ss:$2 sm:$0xff]
    %s1270 = scalar_lea.vmem [#allocation2], 210
    %v1271 = vld [vmem:[%s1270] ss:$2 sm:$0xff]
    %s1272 = scalar_lea.vmem [#allocation2], 226
    %v1273 = vld [vmem:[%s1272] ss:$2 sm:$0xff]
    %s1274 = scalar_lea.vmem [#allocation2], 242
    %v1275 = vld [vmem:[%s1274] ss:$2 sm:$0xff]
    %v1276 = vpack.c.bf16 %v1247, %v1245
    %v1277 = vpack.c.bf16 %v1251, %v1249
    %v1278 = vpack.c.bf16 %v1255, %v1253
    %v1279 = vpack.c.bf16 %v1259, %v1257
    %v1280 = vpack.c.bf16 %v1263, %v1261
    %v1281 = vpack.c.bf16 %v1267, %v1265
    %v1282 = vpack.c.bf16 %v1271, %v1269
    %v1283 = vpack.c.bf16 %v1275, %v1273
    %s1284 = scalar_lea.vmem [#allocation5], 128
    %v1285 = vld [vmem:[%s1284] sm:$0xf]
    %v1286 = vld [vmem:[%s1284 + $0x4] sm:$0xf]
    %v1287 = vld [vmem:[%s1284 + $0x8] sm:$0xf]
    %v1288 = vld [vmem:[%s1284 + $0xc] sm:$0xf]
    %v1289 = vld [vmem:[%s1284 + $0x10] sm:$0xf]
    %v1290 = vld [vmem:[%s1284 + $0x14] sm:$0xf]
    %v1291 = vld [vmem:[%s1284 + $0x18] sm:$0xf]
    %v1292 = vld [vmem:[%s1284 + $0x1c] sm:$0xf]
    %v1293 = vld [vmem:[%s1284 + $0x20] sm:$0xf]
    %v1294 = vld [vmem:[%s1284 + $0x24] sm:$0xf]
    %v1295 = vld [vmem:[%s1284 + $0x28] sm:$0xf]
    %v1296 = vld [vmem:[%s1284 + $0x2c] sm:$0xf]
    %v1297 = vld [vmem:[%s1284 + $0x30] sm:$0xf]
    %v1298 = vld [vmem:[%s1284 + $0x34] sm:$0xf]
    %v1299 = vld [vmem:[%s1284 + $0x38] sm:$0xf]
    %v1300 = vld [vmem:[%s1284 + $0x3c] sm:$0xf]
    %v1317 = vunpack.c.l.b16 %v1285
    %v1318 = vunpack.c.l.b16 %v1286
    %v1319 = vunpack.c.l.b16 %v1287
    %v1320 = vunpack.c.l.b16 %v1288
    %v1321 = vunpack.c.l.b16 %v1289
    %v1322 = vunpack.c.l.b16 %v1290
    %v1323 = vunpack.c.l.b16 %v1291
    %v1324 = vunpack.c.l.b16 %v1292
    %v1325 = vunpack.c.l.b16 %v1293
    %v1326 = vunpack.c.l.b16 %v1294
    %v1327 = vunpack.c.l.b16 %v1295
    %v1328 = vunpack.c.l.b16 %v1296
    %v1329 = vunpack.c.l.b16 %v1297
    %v1330 = vunpack.c.l.b16 %v1298
    %v1331 = vunpack.c.l.b16 %v1299
    %v1332 = vunpack.c.l.b16 %v1300
    %v1333 = vpack.c.b16 %v1318, %v1317
    %v1334 = vpack.c.b16 %v1320, %v1319
    %v1335 = vpack.c.b16 %v1322, %v1321
    %v1336 = vpack.c.b16 %v1324, %v1323
    %v1337 = vpack.c.b16 %v1326, %v1325
    %v1338 = vpack.c.b16 %v1328, %v1327
    %v1339 = vpack.c.b16 %v1330, %v1329
    %v1340 = vpack.c.b16 %v1332, %v1331
    %1349 = vmatprep.subr.bf16.mxu0 0
    %1350 = vmatpush1.bf16.msra.mxu0 %v1340
    %1351 = vmatprep.subr.bf16.mxu0 0
    %1352 = vmatpush1.bf16.msra.mxu0 %v1339
    %1353 = vmatprep.subr.bf16.mxu0 0
    %1354 = vmatpush1.bf16.msra.mxu0 %v1338
    %1355 = vmatprep.subr.bf16.mxu0 0
    %1356 = vmatpush1.bf16.msra.mxu0 %v1337
    %1357 = vmatprep.subr.bf16.mxu0 0
    %1358 = vmatpush1.bf16.msra.mxu0 %v1336
    %1359 = vmatprep.subr.bf16.mxu0 0
    %1360 = vmatpush1.bf16.msra.mxu0 %v1335
    %1361 = vmatprep.subr.bf16.mxu0 0
    %1362 = vmatpush1.bf16.msra.mxu0 %v1334
    %1363 = vmatprep.subr.bf16.mxu0 0
    %1364 = vmatpush1.bf16.msra.mxu0 %v1333
    %1365 = vmatprep.subr.bf16.mxu0 0
    %1366 = vmatpush2.bf16.msra.mxu0 0
    %1367 = vmatprep.subr.bf16.mxu0 0
    %1368 = vmatpush2.bf16.msra.mxu0 0
    %1369 = vmatprep.subr.bf16.mxu0 0
    %1370 = vmatpush2.bf16.msra.mxu0 0
    %1371 = vmatprep.subr.bf16.mxu0 0
    %1372 = vmatpush2.bf16.msra.mxu0 0
    %1373 = vmatprep.subr.bf16.mxu0 0
    %1374 = vmatpush2.bf16.msra.mxu0 0
    %1375 = vmatprep.subr.bf16.mxu0 0
    %1376 = vmatpush2.bf16.msra.mxu0 0
    %1377 = vmatprep.subr.bf16.mxu0 0
    %1378 = vmatpush2.bf16.msra.mxu0 0
    %1379 = vmatprep.subr.bf16.mxu0 0
    %1380 = vmatpush2.bf16.msra.mxu0 0
    %1381 = vmatprep.mubr.bf16.mxu0 0
    %1382 = vmatmul.mubr.bf16.gmra.mxu0 %v1276
    %v1383 = vpop.f32.mrf.mxu0
    %v1384 = vadd.f32 0.0, %v1383
    %v1385 = vpop.f32.mrf.mxu0
    %v1386 = vpop.f32.mrf.mxu0
    %v1387 = vadd.f32 0.0, %v1386
    %v1388 = vpop.f32.mrf.mxu0
    %1389 = vmatprep.mubr.bf16.mxu0 0
    %1390 = vmatmul.mubr.bf16.gmra.mxu0 %v1277
    %v1391 = vpop.f32.mrf.mxu0
    %v1392 = vadd.f32 0.0, %v1391
    %v1393 = vpop.f32.mrf.mxu0
    %v1394 = vpop.f32.mrf.mxu0
    %v1395 = vadd.f32 0.0, %v1394
    %v1396 = vpop.f32.mrf.mxu0
    %1397 = vmatprep.mubr.bf16.mxu0 0
    %1398 = vmatmul.mubr.bf16.gmra.mxu0 %v1278
    %v1399 = vpop.f32.mrf.mxu0
    %v1400 = vadd.f32 0.0, %v1399
    %v1401 = vpop.f32.mrf.mxu0
    %v1402 = vpop.f32.mrf.mxu0
    %v1403 = vadd.f32 0.0, %v1402
    %v1404 = vpop.f32.mrf.mxu0
    %1405 = vmatprep.mubr.bf16.mxu0 0
    %1406 = vmatmul.mubr.bf16.gmra.mxu0 %v1279
    %v1407 = vpop.f32.mrf.mxu0
    %v1408 = vadd.f32 0.0, %v1407
    %v1409 = vpop.f32.mrf.mxu0
    %v1410 = vpop.f32.mrf.mxu0
    %v1411 = vadd.f32 0.0, %v1410
    %v1412 = vpop.f32.mrf.mxu0
    %1413 = vmatprep.mubr.bf16.mxu0 0
    %1414 = vmatmul.mubr.bf16.gmra.mxu0 %v1280
    %v1415 = vpop.f32.mrf.mxu0
    %v1416 = vadd.f32 0.0, %v1415
    %v1417 = vpop.f32.mrf.mxu0
    %v1418 = vpop.f32.mrf.mxu0
    %v1419 = vadd.f32 0.0, %v1418
    %v1420 = vpop.f32.mrf.mxu0
    %1421 = vmatprep.mubr.bf16.mxu0 0
    %1422 = vmatmul.mubr.bf16.gmra.mxu0 %v1281
    %v1423 = vpop.f32.mrf.mxu0
    %v1424 = vadd.f32 0.0, %v1423
    %v1425 = vpop.f32.mrf.mxu0
    %v1426 = vpop.f32.mrf.mxu0
    %v1427 = vadd.f32 0.0, %v1426
    %v1428 = vpop.f32.mrf.mxu0
    %1429 = vmatprep.mubr.bf16.mxu0 0
    %1430 = vmatmul.mubr.bf16.gmra.mxu0 %v1282
    %v1431 = vpop.f32.mrf.mxu0
    %v1432 = vadd.f32 0.0, %v1431
    %v1433 = vpop.f32.mrf.mxu0
    %v1434 = vpop.f32.mrf.mxu0
    %v1435 = vadd.f32 0.0, %v1434
    %v1436 = vpop.f32.mrf.mxu0
    %1437 = vmatprep.mubr.bf16.mxu0 0
    %1438 = vmatmul.mubr.bf16.gmra.mxu0 %v1283
    %v1439 = vpop.f32.mrf.mxu0
    %v1440 = vadd.f32 0.0, %v1439
    %v1441 = vpop.f32.mrf.mxu0
    %v1442 = vpop.f32.mrf.mxu0
    %v1443 = vadd.f32 0.0, %v1442
    %v1444 = vpop.f32.mrf.mxu0
    %1445 = vdwg.mxu0
    %v1446 = vadd.f32 %v1182, %v1384
    %v1447 = vadd.f32 %v1185, %v1387
    %v1448 = vadd.f32 %v1190, %v1392
    %v1449 = vadd.f32 %v1193, %v1395
    %v1450 = vadd.f32 %v1198, %v1400
    %v1451 = vadd.f32 %v1201, %v1403
    %v1452 = vadd.f32 %v1206, %v1408
    %v1453 = vadd.f32 %v1209, %v1411
    %v1454 = vadd.f32 %v1214, %v1416
    %v1455 = vadd.f32 %v1217, %v1419
    %v1456 = vadd.f32 %v1222, %v1424
    %v1457 = vadd.f32 %v1225, %v1427
    %v1458 = vadd.f32 %v1230, %v1432
    %v1459 = vadd.f32 %v1233, %v1435
    %v1460 = vadd.f32 %v1238, %v1440
    %v1461 = vadd.f32 %v1241, %v1443
    %v1462 = vlaneseq
    %v1463 = vshrl.u32 %v1462, 7
    %v1464 = vsub.s32 1, %v1463
    %v1465 = vrot.slane %v52, %v1464
    %v1466 = vadd.f32 %v1446, %v1465
    %v1467 = vadd.f32 %v1447, %v1465
    %v1468 = vadd.f32 %v1448, %v1465
    %v1469 = vadd.f32 %v1449, %v1465
    %v1470 = vadd.f32 %v1450, %v1465
    %v1471 = vadd.f32 %v1451, %v1465
    %v1472 = vadd.f32 %v1452, %v1465
    %v1473 = vadd.f32 %v1453, %v1465
    %v1474 = vadd.f32 %v1454, %v1465
    %v1475 = vadd.f32 %v1455, %v1465
    %v1476 = vadd.f32 %v1456, %v1465
    %v1477 = vadd.f32 %v1457, %v1465
    %v1478 = vadd.f32 %v1458, %v1465
    %v1479 = vadd.f32 %v1459, %v1465
    %v1480 = vadd.f32 %v1460, %v1465
    %v1481 = vadd.f32 %v1461, %v1465
    %v1482 = vmax.f32 %v1466, 0.0
    %v1483 = vmax.f32 %v1467, 0.0
    %v1484 = vmax.f32 %v1468, 0.0
    %v1485 = vmax.f32 %v1469, 0.0
    %v1486 = vmax.f32 %v1470, 0.0
    %v1487 = vmax.f32 %v1471, 0.0
    %v1488 = vmax.f32 %v1472, 0.0
    %v1489 = vmax.f32 %v1473, 0.0
    %v1490 = vmax.f32 %v1474, 0.0
    %v1491 = vmax.f32 %v1475, 0.0
    %v1492 = vmax.f32 %v1476, 0.0
    %v1493 = vmax.f32 %v1477, 0.0
    %v1494 = vmax.f32 %v1478, 0.0
    %v1495 = vmax.f32 %v1479, 0.0
    %v1496 = vmax.f32 %v1480, 0.0
    %v1497 = vmax.f32 %v1481, 0.0
    %v1514 = vrot.slane %v1482, 7
    %v1515 = vrot.slane %v1483, 7
    %v1516 = vsel %vm727, %v1514, %v1515
    %v1517 = vrot.slane %v1484, 7
    %v1518 = vrot.slane %v1485, 7
    %v1519 = vsel %vm727, %v1517, %v1518
    %v1520 = vrot.slane %v1486, 7
    %v1521 = vrot.slane %v1487, 7
    %v1522 = vsel %vm727, %v1520, %v1521
    %v1523 = vrot.slane %v1488, 7
    %v1524 = vrot.slane %v1489, 7
    %v1525 = vsel %vm727, %v1523, %v1524
    %v1526 = vrot.slane %v1490, 7
    %v1527 = vrot.slane %v1491, 7
    %v1528 = vsel %vm727, %v1526, %v1527
    %v1529 = vrot.slane %v1492, 7
    %v1530 = vrot.slane %v1493, 7
    %v1531 = vsel %vm727, %v1529, %v1530
    %v1532 = vrot.slane %v1494, 7
    %v1533 = vrot.slane %v1495, 7
    %v1534 = vsel %vm727, %v1532, %v1533
    %v1535 = vrot.slane %v1496, 7
    %v1536 = vrot.slane %v1497, 7
    %v1537 = vsel %vm727, %v1535, %v1536
    %v1554 = vsel %vm727, 0.0, %v1514
    %v1555 = vsel %vm727, 0.0, %v1517
    %v1556 = vsel %vm727, 0.0, %v1520
    %v1557 = vsel %vm727, 0.0, %v1523
    %v1558 = vsel %vm727, 0.0, %v1526
    %v1559 = vsel %vm727, 0.0, %v1529
    %v1560 = vsel %vm727, 0.0, %v1532
    %v1561 = vsel %vm727, 0.0, %v1535
    %vm1562 = vcmask 1042432
    %v1563 = vsel %vm1562, %v1516, 0.0
    %v1564 = vsel %vm1562, %v1519, 0.0
    %v1565 = vsel %vm1562, %v1522, 0.0
    %v1566 = vsel %vm1562, %v1525, 0.0
    %v1567 = vsel %vm1562, %v1528, 0.0
    %v1568 = vsel %vm1562, %v1531, 0.0
    %v1569 = vsel %vm1562, %v1534, 0.0
    %v1570 = vsel %vm1562, %v1537, 0.0
    %1571 = vst [vmem:[#allocation3] sm:$0xff] %v1554
    %1572 = vst [vmem:[#allocation3 + $0x8] sm:$0xff] %v1563
    %1573 = vst [vmem:[#allocation3 + $0x10] sm:$0xff] %v1555
    %1574 = vst [vmem:[#allocation3 + $0x18] sm:$0xff] %v1564
    %1575 = vst [vmem:[#allocation3 + $0x20] sm:$0xff] %v1556
    %1576 = vst [vmem:[#allocation3 + $0x28] sm:$0xff] %v1565
    %1577 = vst [vmem:[#allocation3 + $0x30] sm:$0xff] %v1557
    %1578 = vst [vmem:[#allocation3 + $0x38] sm:$0xff] %v1566
    %1579 = vst [vmem:[#allocation3 + $0x40] sm:$0xff] %v1558
    %1580 = vst [vmem:[#allocation3 + $0x48] sm:$0xff] %v1567
    %1581 = vst [vmem:[#allocation3 + $0x50] sm:$0xff] %v1559
    %1582 = vst [vmem:[#allocation3 + $0x58] sm:$0xff] %v1568
    %1583 = vst [vmem:[#allocation3 + $0x60] sm:$0xff] %v1560
    %1584 = vst [vmem:[#allocation3 + $0x68] sm:$0xff] %v1569
    %1585 = vst [vmem:[#allocation3 + $0x70] sm:$0xff] %v1561
    %1586 = vst [vmem:[#allocation3 + $0x78] sm:$0xff] %v1570
    %1587 = vst [vmem:[#allocation3 + $0x80] sm:$0xff] 0.0
    %v1588 = vld [vmem:[#allocation3] ss:$2 sm:$0xff]
    %s1589 = scalar_lea.vmem [#allocation3], 16
    %v1590 = vld [vmem:[%s1589] ss:$2 sm:$0xff]
    %s1591 = scalar_lea.vmem [#allocation3], 32
    %v1592 = vld [vmem:[%s1591] ss:$2 sm:$0xff]
    %s1593 = scalar_lea.vmem [#allocation3], 48
    %v1594 = vld [vmem:[%s1593] ss:$2 sm:$0xff]
    %s1595 = scalar_lea.vmem [#allocation3], 64
    %v1596 = vld [vmem:[%s1595] ss:$2 sm:$0xff]
    %s1597 = scalar_lea.vmem [#allocation3], 80
    %v1598 = vld [vmem:[%s1597] ss:$2 sm:$0xff]
    %s1599 = scalar_lea.vmem [#allocation3], 96
    %v1600 = vld [vmem:[%s1599] ss:$2 sm:$0xff]
    %s1601 = scalar_lea.vmem [#allocation3], 112
    %v1602 = vld [vmem:[%s1601] ss:$2 sm:$0xff]
    %v1603 = vpack.c.bf16 %v1590, %v1588
    %v1604 = vpack.c.bf16 %v1594, %v1592
    %v1605 = vpack.c.bf16 %v1598, %v1596
    %v1606 = vpack.c.bf16 %v1602, %v1600
    %v1607 = vld [vmem:[#allocation7] sm:$0xf]
    %v1608 = vld [vmem:[#allocation7 + $0x4] sm:$0xf]
    %v1609 = vld [vmem:[#allocation7 + $0x8] sm:$0xf]
    %v1610 = vld [vmem:[#allocation7 + $0xc] sm:$0xf]
    %v1611 = vld [vmem:[#allocation7 + $0x10] sm:$0xf]
    %v1612 = vld [vmem:[#allocation7 + $0x14] sm:$0xf]
    %v1613 = vld [vmem:[#allocation7 + $0x18] sm:$0xf]
    %v1614 = vld [vmem:[#allocation7 + $0x1c] sm:$0xf]
    %v1615 = vld [vmem:[#allocation7 + $0x20] sm:$0xf]
    %v1616 = vld [vmem:[#allocation7 + $0x24] sm:$0xf]
    %v1617 = vld [vmem:[#allocation7 + $0x28] sm:$0xf]
    %v1618 = vld [vmem:[#allocation7 + $0x2c] sm:$0xf]
    %v1619 = vld [vmem:[#allocation7 + $0x30] sm:$0xf]
    %v1620 = vld [vmem:[#allocation7 + $0x34] sm:$0xf]
    %v1621 = vld [vmem:[#allocation7 + $0x38] sm:$0xf]
    %v1622 = vld [vmem:[#allocation7 + $0x3c] sm:$0xf]
    %s1623 = scalar_lea.vmem [#allocation3], 1
    %v1624 = vld [vmem:[%s1623] ss:$2 sm:$0xff]
    %s1625 = scalar_lea.vmem [#allocation3], 17
    %v1626 = vld [vmem:[%s1625] ss:$2 sm:$0xff]
    %s1627 = scalar_lea.vmem [#allocation3], 33
    %v1628 = vld [vmem:[%s1627] ss:$2 sm:$0xff]
    %s1629 = scalar_lea.vmem [#allocation3], 49
    %v1630 = vld [vmem:[%s1629] ss:$2 sm:$0xff]
    %s1631 = scalar_lea.vmem [#allocation3], 65
    %v1632 = vld [vmem:[%s1631] ss:$2 sm:$0xff]
    %s1633 = scalar_lea.vmem [#allocation3], 81
    %v1634 = vld [vmem:[%s1633] ss:$2 sm:$0xff]
    %s1635 = scalar_lea.vmem [#allocation3], 97
    %v1636 = vld [vmem:[%s1635] ss:$2 sm:$0xff]
    %s1637 = scalar_lea.vmem [#allocation3], 113
    %v1638 = vld [vmem:[%s1637] ss:$2 sm:$0xff]
    %v1639 = vpack.c.bf16 %v1626, %v1624
    %v1640 = vpack.c.bf16 %v1630, %v1628
    %v1641 = vpack.c.bf16 %v1634, %v1632
    %v1642 = vpack.c.bf16 %v1638, %v1636
    %s1643 = scalar_lea.vmem [#allocation7], 64
    %v1644 = vld [vmem:[%s1643] sm:$0xf]
    %v1645 = vld [vmem:[%s1643 + $0x4] sm:$0xf]
    %v1646 = vld [vmem:[%s1643 + $0x8] sm:$0xf]
    %v1647 = vld [vmem:[%s1643 + $0xc] sm:$0xf]
    %v1648 = vld [vmem:[%s1643 + $0x10] sm:$0xf]
    %v1649 = vld [vmem:[%s1643 + $0x14] sm:$0xf]
    %v1650 = vld [vmem:[%s1643 + $0x18] sm:$0xf]
    %v1651 = vld [vmem:[%s1643 + $0x1c] sm:$0xf]
    %v1652 = vld [vmem:[%s1643 + $0x20] sm:$0xf]
    %v1653 = vld [vmem:[%s1643 + $0x24] sm:$0xf]
    %v1654 = vld [vmem:[%s1643 + $0x28] sm:$0xf]
    %v1655 = vld [vmem:[%s1643 + $0x2c] sm:$0xf]
    %v1656 = vld [vmem:[%s1643 + $0x30] sm:$0xf]
    %v1657 = vld [vmem:[%s1643 + $0x34] sm:$0xf]
    %v1658 = vld [vmem:[%s1643 + $0x38] sm:$0xf]
    %v1659 = vld [vmem:[%s1643 + $0x3c] sm:$0xf]
    %v1676 = vunpack.c.l.b16 %v1644
    %v1677 = vunpack.c.l.b16 %v1645
    %v1678 = vunpack.c.l.b16 %v1646
    %v1679 = vunpack.c.l.b16 %v1647
    %v1680 = vunpack.c.l.b16 %v1648
    %v1681 = vunpack.c.l.b16 %v1649
    %v1682 = vunpack.c.l.b16 %v1650
    %v1683 = vunpack.c.l.b16 %v1651
    %v1684 = vunpack.c.l.b16 %v1652
    %v1685 = vunpack.c.l.b16 %v1653
    %v1686 = vunpack.c.l.b16 %v1654
    %v1687 = vunpack.c.l.b16 %v1655
    %v1688 = vunpack.c.l.b16 %v1656
    %v1689 = vunpack.c.l.b16 %v1657
    %v1690 = vunpack.c.l.b16 %v1658
    %v1691 = vunpack.c.l.b16 %v1659
    %v1692 = vpack.c.b16 %v1677, %v1676
    %v1693 = vpack.c.b16 %v1679, %v1678
    %v1694 = vpack.c.b16 %v1681, %v1680
    %v1695 = vpack.c.b16 %v1683, %v1682
    %v1696 = vpack.c.b16 %v1685, %v1684
    %v1697 = vpack.c.b16 %v1687, %v1686
    %v1698 = vpack.c.b16 %v1689, %v1688
    %v1699 = vpack.c.b16 %v1691, %v1690
    %1708 = vmatprep.subr.bf16.mxu0 0
    %1709 = vmatpush1.bf16.msra.mxu0 %v1699
    %1710 = vmatprep.subr.bf16.mxu0 0
    %1711 = vmatpush1.bf16.msra.mxu0 %v1698
    %1712 = vmatprep.subr.bf16.mxu0 0
    %1713 = vmatpush1.bf16.msra.mxu0 %v1697
    %1714 = vmatprep.subr.bf16.mxu0 0
    %1715 = vmatpush1.bf16.msra.mxu0 %v1696
    %1716 = vmatprep.subr.bf16.mxu0 0
    %1717 = vmatpush1.bf16.msra.mxu0 %v1695
    %1718 = vmatprep.subr.bf16.mxu0 0
    %1719 = vmatpush1.bf16.msra.mxu0 %v1694
    %1720 = vmatprep.subr.bf16.mxu0 0
    %1721 = vmatpush1.bf16.msra.mxu0 %v1693
    %1722 = vmatprep.subr.bf16.mxu0 0
    %1723 = vmatpush1.bf16.msra.mxu0 %v1692
    %1724 = vmatprep.subr.bf16.mxu0 0
    %1725 = vmatpush2.bf16.msra.mxu0 0
    %1726 = vmatprep.subr.bf16.mxu0 0
    %1727 = vmatpush2.bf16.msra.mxu0 0
    %1728 = vmatprep.subr.bf16.mxu0 0
    %1729 = vmatpush2.bf16.msra.mxu0 0
    %1730 = vmatprep.subr.bf16.mxu0 0
    %1731 = vmatpush2.bf16.msra.mxu0 0
    %1732 = vmatprep.subr.bf16.mxu0 0
    %1733 = vmatpush2.bf16.msra.mxu0 0
    %1734 = vmatprep.subr.bf16.mxu0 0
    %1735 = vmatpush2.bf16.msra.mxu0 0
    %1736 = vmatprep.subr.bf16.mxu0 0
    %1737 = vmatpush2.bf16.msra.mxu0 0
    %1738 = vmatprep.subr.bf16.mxu0 0
    %1739 = vmatpush2.bf16.msra.mxu0 0
    %1740 = vmatprep.mubr.bf16.mxu0 0
    %1741 = vmatmul.mubr.bf16.gmra.mxu0 %v1639
    %v1742 = vpop.f32.mrf.mxu0
    %v1743 = vadd.f32 0.0, %v1742
    %v1744 = vpop.f32.mrf.mxu0
    %v1745 = vpop.f32.mrf.mxu0
    %v1746 = vadd.f32 0.0, %v1745
    %v1747 = vpop.f32.mrf.mxu0
    %1748 = vmatprep.mubr.bf16.mxu0 0
    %1749 = vmatmul.mubr.bf16.gmra.mxu0 %v1640
    %v1750 = vpop.f32.mrf.mxu0
    %v1751 = vadd.f32 0.0, %v1750
    %v1752 = vpop.f32.mrf.mxu0
    %v1753 = vpop.f32.mrf.mxu0
    %v1754 = vadd.f32 0.0, %v1753
    %v1755 = vpop.f32.mrf.mxu0
    %1756 = vmatprep.mubr.bf16.mxu0 0
    %1757 = vmatmul.mubr.bf16.gmra.mxu0 %v1641
    %v1758 = vpop.f32.mrf.mxu0
    %v1759 = vadd.f32 0.0, %v1758
    %v1760 = vpop.f32.mrf.mxu0
    %v1761 = vpop.f32.mrf.mxu0
    %v1762 = vadd.f32 0.0, %v1761
    %v1763 = vpop.f32.mrf.mxu0
    %1764 = vmatprep.mubr.bf16.mxu0 0
    %1765 = vmatmul.mubr.bf16.gmra.mxu0 %v1642
    %v1766 = vpop.f32.mrf.mxu0
    %v1767 = vadd.f32 0.0, %v1766
    %v1768 = vpop.f32.mrf.mxu0
    %v1769 = vpop.f32.mrf.mxu0
    %v1770 = vadd.f32 0.0, %v1769
    %v1771 = vpop.f32.mrf.mxu0
    %1772 = vdwg.mxu0
    %v1789 = vunpack.c.l.b16 %v1607
    %v1790 = vunpack.c.l.b16 %v1608
    %v1791 = vunpack.c.l.b16 %v1609
    %v1792 = vunpack.c.l.b16 %v1610
    %v1793 = vunpack.c.l.b16 %v1611
    %v1794 = vunpack.c.l.b16 %v1612
    %v1795 = vunpack.c.l.b16 %v1613
    %v1796 = vunpack.c.l.b16 %v1614
    %v1797 = vunpack.c.l.b16 %v1615
    %v1798 = vunpack.c.l.b16 %v1616
    %v1799 = vunpack.c.l.b16 %v1617
    %v1800 = vunpack.c.l.b16 %v1618
    %v1801 = vunpack.c.l.b16 %v1619
    %v1802 = vunpack.c.l.b16 %v1620
    %v1803 = vunpack.c.l.b16 %v1621
    %v1804 = vunpack.c.l.b16 %v1622
    %v1805 = vpack.c.b16 %v1790, %v1789
    %v1806 = vpack.c.b16 %v1792, %v1791
    %v1807 = vpack.c.b16 %v1794, %v1793
    %v1808 = vpack.c.b16 %v1796, %v1795
    %v1809 = vpack.c.b16 %v1798, %v1797
    %v1810 = vpack.c.b16 %v1800, %v1799
    %v1811 = vpack.c.b16 %v1802, %v1801
    %v1812 = vpack.c.b16 %v1804, %v1803
    %1821 = vmatprep.subr.bf16.mxu0 0
    %1822 = vmatpush1.bf16.msra.mxu0 %v1812
    %1823 = vmatprep.subr.bf16.mxu0 0
    %1824 = vmatpush1.bf16.msra.mxu0 %v1811
    %1825 = vmatprep.subr.bf16.mxu0 0
    %1826 = vmatpush1.bf16.msra.mxu0 %v1810
    %1827 = vmatprep.subr.bf16.mxu0 0
    %1828 = vmatpush1.bf16.msra.mxu0 %v1809
    %1829 = vmatprep.subr.bf16.mxu0 0
    %1830 = vmatpush1.bf16.msra.mxu0 %v1808
    %1831 = vmatprep.subr.bf16.mxu0 0
    %1832 = vmatpush1.bf16.msra.mxu0 %v1807
    %1833 = vmatprep.subr.bf16.mxu0 0
    %1834 = vmatpush1.bf16.msra.mxu0 %v1806
    %1835 = vmatprep.subr.bf16.mxu0 0
    %1836 = vmatpush1.bf16.msra.mxu0 %v1805
    %1837 = vmatprep.subr.bf16.mxu0 0
    %1838 = vmatpush2.bf16.msra.mxu0 0
    %1839 = vmatprep.subr.bf16.mxu0 0
    %1840 = vmatpush2.bf16.msra.mxu0 0
    %1841 = vmatprep.subr.bf16.mxu0 0
    %1842 = vmatpush2.bf16.msra.mxu0 0
    %1843 = vmatprep.subr.bf16.mxu0 0
    %1844 = vmatpush2.bf16.msra.mxu0 0
    %1845 = vmatprep.subr.bf16.mxu0 0
    %1846 = vmatpush2.bf16.msra.mxu0 0
    %1847 = vmatprep.subr.bf16.mxu0 0
    %1848 = vmatpush2.bf16.msra.mxu0 0
    %1849 = vmatprep.subr.bf16.mxu0 0
    %1850 = vmatpush2.bf16.msra.mxu0 0
    %1851 = vmatprep.subr.bf16.mxu0 0
    %1852 = vmatpush2.bf16.msra.mxu0 0
    %1853 = vmatprep.mubr.bf16.mxu0 0
    %1854 = vmatmul.mubr.bf16.gmra.mxu0 %v1603
    %v1855 = vpop.f32.mrf.mxu0
    %v1856 = vadd.f32 %v1743, %v1855
    %v1857 = vpop.f32.mrf.mxu0
    %v1858 = vpop.f32.mrf.mxu0
    %v1859 = vadd.f32 %v1746, %v1858
    %v1860 = vpop.f32.mrf.mxu0
    %1861 = vmatprep.mubr.bf16.mxu0 0
    %1862 = vmatmul.mubr.bf16.gmra.mxu0 %v1604
    %v1863 = vpop.f32.mrf.mxu0
    %v1864 = vadd.f32 %v1751, %v1863
    %v1865 = vpop.f32.mrf.mxu0
    %v1866 = vpop.f32.mrf.mxu0
    %v1867 = vadd.f32 %v1754, %v1866
    %v1868 = vpop.f32.mrf.mxu0
    %1869 = vmatprep.mubr.bf16.mxu0 0
    %1870 = vmatmul.mubr.bf16.gmra.mxu0 %v1605
    %v1871 = vpop.f32.mrf.mxu0
    %v1872 = vadd.f32 %v1759, %v1871
    %v1873 = vpop.f32.mrf.mxu0
    %v1874 = vpop.f32.mrf.mxu0
    %v1875 = vadd.f32 %v1762, %v1874
    %v1876 = vpop.f32.mrf.mxu0
    %1877 = vmatprep.mubr.bf16.mxu0 0
    %1878 = vmatmul.mubr.bf16.gmra.mxu0 %v1606
    %v1879 = vpop.f32.mrf.mxu0
    %v1880 = vadd.f32 %v1767, %v1879
    %v1881 = vpop.f32.mrf.mxu0
    %v1882 = vpop.f32.mrf.mxu0
    %v1883 = vadd.f32 %v1770, %v1882
    %v1884 = vpop.f32.mrf.mxu0
    %1885 = vdwg.mxu0
    %s1886 = scalar_lea.vmem [#allocation3], 2
    %v1887 = vld [vmem:[%s1886] ss:$2 sm:$0xff]
    %s1888 = scalar_lea.vmem [#allocation3], 18
    %v1889 = vld [vmem:[%s1888] ss:$2 sm:$0xff]
    %s1890 = scalar_lea.vmem [#allocation3], 34
    %v1891 = vld [vmem:[%s1890] ss:$2 sm:$0xff]
    %s1892 = scalar_lea.vmem [#allocation3], 50
    %v1893 = vld [vmem:[%s1892] ss:$2 sm:$0xff]
    %s1894 = scalar_lea.vmem [#allocation3], 66
    %v1895 = vld [vmem:[%s1894] ss:$2 sm:$0xff]
    %s1896 = scalar_lea.vmem [#allocation3], 82
    %v1897 = vld [vmem:[%s1896] ss:$2 sm:$0xff]
    %s1898 = scalar_lea.vmem [#allocation3], 98
    %v1899 = vld [vmem:[%s1898] ss:$2 sm:$0xff]
    %s1900 = scalar_lea.vmem [#allocation3], 114
    %v1901 = vld [vmem:[%s1900] ss:$2 sm:$0xff]
    %v1902 = vpack.c.bf16 %v1889, %v1887
    %v1903 = vpack.c.bf16 %v1893, %v1891
    %v1904 = vpack.c.bf16 %v1897, %v1895
    %v1905 = vpack.c.bf16 %v1901, %v1899
    %s1906 = scalar_lea.vmem [#allocation7], 128
    %v1907 = vld [vmem:[%s1906] sm:$0xf]
    %v1908 = vld [vmem:[%s1906 + $0x4] sm:$0xf]
    %v1909 = vld [vmem:[%s1906 + $0x8] sm:$0xf]
    %v1910 = vld [vmem:[%s1906 + $0xc] sm:$0xf]
    %v1911 = vld [vmem:[%s1906 + $0x10] sm:$0xf]
    %v1912 = vld [vmem:[%s1906 + $0x14] sm:$0xf]
    %v1913 = vld [vmem:[%s1906 + $0x18] sm:$0xf]
    %v1914 = vld [vmem:[%s1906 + $0x1c] sm:$0xf]
    %v1915 = vld [vmem:[%s1906 + $0x20] sm:$0xf]
    %v1916 = vld [vmem:[%s1906 + $0x24] sm:$0xf]
    %v1917 = vld [vmem:[%s1906 + $0x28] sm:$0xf]
    %v1918 = vld [vmem:[%s1906 + $0x2c] sm:$0xf]
    %v1919 = vld [vmem:[%s1906 + $0x30] sm:$0xf]
    %v1920 = vld [vmem:[%s1906 + $0x34] sm:$0xf]
    %v1921 = vld [vmem:[%s1906 + $0x38] sm:$0xf]
    %v1922 = vld [vmem:[%s1906 + $0x3c] sm:$0xf]
    %v1939 = vunpack.c.l.b16 %v1907
    %v1940 = vunpack.c.l.b16 %v1908
    %v1941 = vunpack.c.l.b16 %v1909
    %v1942 = vunpack.c.l.b16 %v1910
    %v1943 = vunpack.c.l.b16 %v1911
    %v1944 = vunpack.c.l.b16 %v1912
    %v1945 = vunpack.c.l.b16 %v1913
    %v1946 = vunpack.c.l.b16 %v1914
    %v1947 = vunpack.c.l.b16 %v1915
    %v1948 = vunpack.c.l.b16 %v1916
    %v1949 = vunpack.c.l.b16 %v1917
    %v1950 = vunpack.c.l.b16 %v1918
    %v1951 = vunpack.c.l.b16 %v1919
    %v1952 = vunpack.c.l.b16 %v1920
    %v1953 = vunpack.c.l.b16 %v1921
    %v1954 = vunpack.c.l.b16 %v1922
    %v1955 = vpack.c.b16 %v1940, %v1939
    %v1956 = vpack.c.b16 %v1942, %v1941
    %v1957 = vpack.c.b16 %v1944, %v1943
    %v1958 = vpack.c.b16 %v1946, %v1945
    %v1959 = vpack.c.b16 %v1948, %v1947
    %v1960 = vpack.c.b16 %v1950, %v1949
    %v1961 = vpack.c.b16 %v1952, %v1951
    %v1962 = vpack.c.b16 %v1954, %v1953
    %1971 = vmatprep.subr.bf16.mxu0 0
    %1972 = vmatpush1.bf16.msra.mxu0 %v1962
    %1973 = vmatprep.subr.bf16.mxu0 0
    %1974 = vmatpush1.bf16.msra.mxu0 %v1961
    %1975 = vmatprep.subr.bf16.mxu0 0
    %1976 = vmatpush1.bf16.msra.mxu0 %v1960
    %1977 = vmatprep.subr.bf16.mxu0 0
    %1978 = vmatpush1.bf16.msra.mxu0 %v1959
    %1979 = vmatprep.subr.bf16.mxu0 0
    %1980 = vmatpush1.bf16.msra.mxu0 %v1958
    %1981 = vmatprep.subr.bf16.mxu0 0
    %1982 = vmatpush1.bf16.msra.mxu0 %v1957
    %1983 = vmatprep.subr.bf16.mxu0 0
    %1984 = vmatpush1.bf16.msra.mxu0 %v1956
    %1985 = vmatprep.subr.bf16.mxu0 0
    %1986 = vmatpush1.bf16.msra.mxu0 %v1955
    %1987 = vmatprep.subr.bf16.mxu0 0
    %1988 = vmatpush2.bf16.msra.mxu0 0
    %1989 = vmatprep.subr.bf16.mxu0 0
    %1990 = vmatpush2.bf16.msra.mxu0 0
    %1991 = vmatprep.subr.bf16.mxu0 0
    %1992 = vmatpush2.bf16.msra.mxu0 0
    %1993 = vmatprep.subr.bf16.mxu0 0
    %1994 = vmatpush2.bf16.msra.mxu0 0
    %1995 = vmatprep.subr.bf16.mxu0 0
    %1996 = vmatpush2.bf16.msra.mxu0 0
    %1997 = vmatprep.subr.bf16.mxu0 0
    %1998 = vmatpush2.bf16.msra.mxu0 0
    %1999 = vmatprep.subr.bf16.mxu0 0
    %2000 = vmatpush2.bf16.msra.mxu0 0
    %2001 = vmatprep.subr.bf16.mxu0 0
    %2002 = vmatpush2.bf16.msra.mxu0 0
    %2003 = vmatprep.mubr.bf16.mxu0 0
    %2004 = vmatmul.mubr.bf16.gmra.mxu0 %v1902
    %v2005 = vpop.f32.mrf.mxu0
    %v2006 = vadd.f32 0.0, %v2005
    %v2007 = vpop.f32.mrf.mxu0
    %v2008 = vpop.f32.mrf.mxu0
    %v2009 = vadd.f32 0.0, %v2008
    %v2010 = vpop.f32.mrf.mxu0
    %2011 = vmatprep.mubr.bf16.mxu0 0
    %2012 = vmatmul.mubr.bf16.gmra.mxu0 %v1903
    %v2013 = vpop.f32.mrf.mxu0
    %v2014 = vadd.f32 0.0, %v2013
    %v2015 = vpop.f32.mrf.mxu0
    %v2016 = vpop.f32.mrf.mxu0
    %v2017 = vadd.f32 0.0, %v2016
    %v2018 = vpop.f32.mrf.mxu0
    %2019 = vmatprep.mubr.bf16.mxu0 0
    %2020 = vmatmul.mubr.bf16.gmra.mxu0 %v1904
    %v2021 = vpop.f32.mrf.mxu0
    %v2022 = vadd.f32 0.0, %v2021
    %v2023 = vpop.f32.mrf.mxu0
    %v2024 = vpop.f32.mrf.mxu0
    %v2025 = vadd.f32 0.0, %v2024
    %v2026 = vpop.f32.mrf.mxu0
    %2027 = vmatprep.mubr.bf16.mxu0 0
    %2028 = vmatmul.mubr.bf16.gmra.mxu0 %v1905
    %v2029 = vpop.f32.mrf.mxu0
    %v2030 = vadd.f32 0.0, %v2029
    %v2031 = vpop.f32.mrf.mxu0
    %v2032 = vpop.f32.mrf.mxu0
    %v2033 = vadd.f32 0.0, %v2032
    %v2034 = vpop.f32.mrf.mxu0
    %2035 = vdwg.mxu0
    %v2036 = vadd.f32 %v1856, %v2006
    %v2037 = vadd.f32 %v1859, %v2009
    %v2038 = vadd.f32 %v1864, %v2014
    %v2039 = vadd.f32 %v1867, %v2017
    %v2040 = vadd.f32 %v1872, %v2022
    %v2041 = vadd.f32 %v1875, %v2025
    %v2042 = vadd.f32 %v1880, %v2030
    %v2043 = vadd.f32 %v1883, %v2033
    %v2044 = vlaneseq
    %v2045 = vshrl.u32 %v2044, 7
    %v2046 = vsub.s32 2, %v2045
    %v2047 = vrot.slane %v52, %v2046
    %v2048 = vadd.f32 %v2036, %v2047
    %v2049 = vadd.f32 %v2037, %v2047
    %v2050 = vadd.f32 %v2038, %v2047
    %v2051 = vadd.f32 %v2039, %v2047
    %v2052 = vadd.f32 %v2040, %v2047
    %v2053 = vadd.f32 %v2041, %v2047
    %v2054 = vadd.f32 %v2042, %v2047
    %v2055 = vadd.f32 %v2043, %v2047
    %v2056 = vmax.f32 %v2048, 0.0
    %v2057 = vmax.f32 %v2049, 0.0
    %v2058 = vmax.f32 %v2050, 0.0
    %v2059 = vmax.f32 %v2051, 0.0
    %v2060 = vmax.f32 %v2052, 0.0
    %v2061 = vmax.f32 %v2053, 0.0
    %v2062 = vmax.f32 %v2054, 0.0
    %v2063 = vmax.f32 %v2055, 0.0
    %2064 = vst [vmem:[#allocation4] sm:$0xff] %v2056
    %2065 = vst [vmem:[#allocation4 + $0x8] sm:$0xff] %v2057
    %2066 = vst [vmem:[#allocation4 + $0x10] sm:$0xff] %v2058
    %2067 = vst [vmem:[#allocation4 + $0x18] sm:$0xff] %v2059
    %2068 = vst [vmem:[#allocation4 + $0x20] sm:$0xff] %v2060
    %2069 = vst [vmem:[#allocation4 + $0x28] sm:$0xff] %v2061
    %2070 = vst [vmem:[#allocation4 + $0x30] sm:$0xff] %v2062
    %2071 = vst [vmem:[#allocation4 + $0x38] sm:$0xff] %v2063
    %v2072 = vld [vmem:[#allocation4] ss:$8 sm:$0xf]
    %v2073 = vld [vmem:[#allocation4] ss:$8 sm:$0xf0]
    %v2074 = vor.u32 %v2072, %v2073
    %v2075 = vpack.c.bf16 %v2074, %v2074
    %v2076 = vld [vmem:[%s4] sm:$0xf]
    %v2077 = vld [vmem:[%s4 + $0x4] sm:$0xf]
    %v2078 = vld [vmem:[%s4 + $0x8] sm:$0xf]
    %v2079 = vld [vmem:[%s4 + $0xc] sm:$0xf]
    %v2080 = vld [vmem:[%s4 + $0x10] sm:$0xf]
    %v2081 = vld [vmem:[%s4 + $0x14] sm:$0xf]
    %v2082 = vld [vmem:[%s4 + $0x18] sm:$0xf]
    %v2083 = vld [vmem:[%s4 + $0x1c] sm:$0xf]
    %v2084 = vld [vmem:[%s4 + $0x20] sm:$0xf]
    %v2085 = vld [vmem:[%s4 + $0x24] sm:$0xf]
    %v2086 = vld [vmem:[%s4 + $0x28] sm:$0xf]
    %v2087 = vld [vmem:[%s4 + $0x2c] sm:$0xf]
    %v2088 = vld [vmem:[%s4 + $0x30] sm:$0xf]
    %v2089 = vld [vmem:[%s4 + $0x34] sm:$0xf]
    %v2090 = vld [vmem:[%s4 + $0x38] sm:$0xf]
    %v2091 = vld [vmem:[%s4 + $0x3c] sm:$0xf]
    %s2092 = scalar_lea.vmem [#allocation4], 1
    %v2093 = vld [vmem:[%s2092] ss:$8 sm:$0xf]
    %v2094 = vld [vmem:[%s2092] ss:$8 sm:$0xf0]
    %v2095 = vor.u32 %v2093, %v2094
    %v2096 = vpack.c.bf16 %v2095, %v2095
    %s2097 = scalar_lea.vmem %s4, 64
    %v2098 = vld [vmem:[%s2097] sm:$0xf]
    %v2099 = vld [vmem:[%s2097 + $0x4] sm:$0xf]
    %v2100 = vld [vmem:[%s2097 + $0x8] sm:$0xf]
    %v2101 = vld [vmem:[%s2097 + $0xc] sm:$0xf]
    %v2102 = vld [vmem:[%s2097 + $0x10] sm:$0xf]
    %v2103 = vld [vmem:[%s2097 + $0x14] sm:$0xf]
    %v2104 = vld [vmem:[%s2097 + $0x18] sm:$0xf]
    %v2105 = vld [vmem:[%s2097 + $0x1c] sm:$0xf]
    %v2106 = vld [vmem:[%s2097 + $0x20] sm:$0xf]
    %v2107 = vld [vmem:[%s2097 + $0x24] sm:$0xf]
    %v2108 = vld [vmem:[%s2097 + $0x28] sm:$0xf]
    %v2109 = vld [vmem:[%s2097 + $0x2c] sm:$0xf]
    %v2110 = vld [vmem:[%s2097 + $0x30] sm:$0xf]
    %v2111 = vld [vmem:[%s2097 + $0x34] sm:$0xf]
    %v2112 = vld [vmem:[%s2097 + $0x38] sm:$0xf]
    %v2113 = vld [vmem:[%s2097 + $0x3c] sm:$0xf]
    %v2130 = vunpack.c.l.b16 %v2098
    %v2131 = vunpack.c.l.b16 %v2099
    %v2132 = vunpack.c.l.b16 %v2100
    %v2133 = vunpack.c.l.b16 %v2101
    %v2134 = vunpack.c.l.b16 %v2102
    %v2135 = vunpack.c.l.b16 %v2103
    %v2136 = vunpack.c.l.b16 %v2104
    %v2137 = vunpack.c.l.b16 %v2105
    %v2138 = vunpack.c.l.b16 %v2106
    %v2139 = vunpack.c.l.b16 %v2107
    %v2140 = vunpack.c.l.b16 %v2108
    %v2141 = vunpack.c.l.b16 %v2109
    %v2142 = vunpack.c.l.b16 %v2110
    %v2143 = vunpack.c.l.b16 %v2111
    %v2144 = vunpack.c.l.b16 %v2112
    %v2145 = vunpack.c.l.b16 %v2113
    %v2146 = vpack.c.b16 %v2131, %v2130
    %v2147 = vpack.c.b16 %v2133, %v2132
    %v2148 = vpack.c.b16 %v2135, %v2134
    %v2149 = vpack.c.b16 %v2137, %v2136
    %v2150 = vpack.c.b16 %v2139, %v2138
    %v2151 = vpack.c.b16 %v2141, %v2140
    %v2152 = vpack.c.b16 %v2143, %v2142
    %v2153 = vpack.c.b16 %v2145, %v2144
    %2162 = vmatprep.subr.bf16.mxu0 0
    %2163 = vmatpush1.bf16.msra.mxu0 %v2153
    %2164 = vmatprep.subr.bf16.mxu0 0
    %2165 = vmatpush1.bf16.msra.mxu0 %v2152
    %2166 = vmatprep.subr.bf16.mxu0 0
    %2167 = vmatpush1.bf16.msra.mxu0 %v2151
    %2168 = vmatprep.subr.bf16.mxu0 0
    %2169 = vmatpush1.bf16.msra.mxu0 %v2150
    %2170 = vmatprep.subr.bf16.mxu0 0
    %2171 = vmatpush1.bf16.msra.mxu0 %v2149
    %2172 = vmatprep.subr.bf16.mxu0 0
    %2173 = vmatpush1.bf16.msra.mxu0 %v2148
    %2174 = vmatprep.subr.bf16.mxu0 0
    %2175 = vmatpush1.bf16.msra.mxu0 %v2147
    %2176 = vmatprep.subr.bf16.mxu0 0
    %2177 = vmatpush1.bf16.msra.mxu0 %v2146
    %2178 = vmatprep.subr.bf16.mxu0 0
    %2179 = vmatpush2.bf16.msra.mxu0 0
    %2180 = vmatprep.subr.bf16.mxu0 0
    %2181 = vmatpush2.bf16.msra.mxu0 0
    %2182 = vmatprep.subr.bf16.mxu0 0
    %2183 = vmatpush2.bf16.msra.mxu0 0
    %2184 = vmatprep.subr.bf16.mxu0 0
    %2185 = vmatpush2.bf16.msra.mxu0 0
    %2186 = vmatprep.subr.bf16.mxu0 0
    %2187 = vmatpush2.bf16.msra.mxu0 0
    %2188 = vmatprep.subr.bf16.mxu0 0
    %2189 = vmatpush2.bf16.msra.mxu0 0
    %2190 = vmatprep.subr.bf16.mxu0 0
    %2191 = vmatpush2.bf16.msra.mxu0 0
    %2192 = vmatprep.subr.bf16.mxu0 0
    %2193 = vmatpush2.bf16.msra.mxu0 0
    %2194 = vmatprep.mubr.bf16.mxu0 0
    %2195 = vmatmul.mubr.bf16.gmra.mxu0 %v2096
    %v2196 = vpop.f32.mrf.mxu0
    %v2197 = vadd.f32 0.0, %v2196
    %v2198 = vpop.f32.mrf.mxu0
    %v2199 = vpop.f32.mrf.mxu0
    %v2200 = vpop.f32.mrf.mxu0
    %2201 = vdwg.mxu0
    %v2218 = vunpack.c.l.b16 %v2076
    %v2219 = vunpack.c.l.b16 %v2077
    %v2220 = vunpack.c.l.b16 %v2078
    %v2221 = vunpack.c.l.b16 %v2079
    %v2222 = vunpack.c.l.b16 %v2080
    %v2223 = vunpack.c.l.b16 %v2081
    %v2224 = vunpack.c.l.b16 %v2082
    %v2225 = vunpack.c.l.b16 %v2083
    %v2226 = vunpack.c.l.b16 %v2084
    %v2227 = vunpack.c.l.b16 %v2085
    %v2228 = vunpack.c.l.b16 %v2086
    %v2229 = vunpack.c.l.b16 %v2087
    %v2230 = vunpack.c.l.b16 %v2088
    %v2231 = vunpack.c.l.b16 %v2089
    %v2232 = vunpack.c.l.b16 %v2090
    %v2233 = vunpack.c.l.b16 %v2091
    %v2234 = vpack.c.b16 %v2219, %v2218
    %v2235 = vpack.c.b16 %v2221, %v2220
    %v2236 = vpack.c.b16 %v2223, %v2222
    %v2237 = vpack.c.b16 %v2225, %v2224
    %v2238 = vpack.c.b16 %v2227, %v2226
    %v2239 = vpack.c.b16 %v2229, %v2228
    %v2240 = vpack.c.b16 %v2231, %v2230
    %v2241 = vpack.c.b16 %v2233, %v2232
    %2250 = vmatprep.subr.bf16.mxu0 0
    %2251 = vmatpush1.bf16.msra.mxu0 %v2241
    %2252 = vmatprep.subr.bf16.mxu0 0
    %2253 = vmatpush1.bf16.msra.mxu0 %v2240
    %2254 = vmatprep.subr.bf16.mxu0 0
    %2255 = vmatpush1.bf16.msra.mxu0 %v2239
    %2256 = vmatprep.subr.bf16.mxu0 0
    %2257 = vmatpush1.bf16.msra.mxu0 %v2238
    %2258 = vmatprep.subr.bf16.mxu0 0
    %2259 = vmatpush1.bf16.msra.mxu0 %v2237
    %2260 = vmatprep.subr.bf16.mxu0 0
    %2261 = vmatpush1.bf16.msra.mxu0 %v2236
    %2262 = vmatprep.subr.bf16.mxu0 0
    %2263 = vmatpush1.bf16.msra.mxu0 %v2235
    %2264 = vmatprep.subr.bf16.mxu0 0
    %2265 = vmatpush1.bf16.msra.mxu0 %v2234
    %2266 = vmatprep.subr.bf16.mxu0 0
    %2267 = vmatpush2.bf16.msra.mxu0 0
    %2268 = vmatprep.subr.bf16.mxu0 0
    %2269 = vmatpush2.bf16.msra.mxu0 0
    %2270 = vmatprep.subr.bf16.mxu0 0
    %2271 = vmatpush2.bf16.msra.mxu0 0
    %2272 = vmatprep.subr.bf16.mxu0 0
    %2273 = vmatpush2.bf16.msra.mxu0 0
    %2274 = vmatprep.subr.bf16.mxu0 0
    %2275 = vmatpush2.bf16.msra.mxu0 0
    %2276 = vmatprep.subr.bf16.mxu0 0
    %2277 = vmatpush2.bf16.msra.mxu0 0
    %2278 = vmatprep.subr.bf16.mxu0 0
    %2279 = vmatpush2.bf16.msra.mxu0 0
    %2280 = vmatprep.subr.bf16.mxu0 0
    %2281 = vmatpush2.bf16.msra.mxu0 0
    %2282 = vmatprep.mubr.bf16.mxu0 0
    %2283 = vmatmul.mubr.bf16.gmra.mxu0 %v2075
    %v2284 = vpop.f32.mrf.mxu0
    %v2285 = vadd.f32 %v2197, %v2284
    %v2286 = vpop.f32.mrf.mxu0
    %v2287 = vpop.f32.mrf.mxu0
    %v2288 = vpop.f32.mrf.mxu0
    %2289 = vdwg.mxu0
    %s2290 = scalar_lea.vmem [#allocation4], 2
    %v2291 = vld [vmem:[%s2290] ss:$8 sm:$0xf]
    %v2292 = vld [vmem:[%s2290] ss:$8 sm:$0xf0]
    %v2293 = vor.u32 %v2291, %v2292
    %v2294 = vpack.c.bf16 %v2293, %v2293
    %s2295 = scalar_lea.vmem %s4, 128
    %v2296 = vld [vmem:[%s2295] sm:$0xf]
    %v2297 = vld [vmem:[%s2295 + $0x4] sm:$0xf]
    %v2298 = vld [vmem:[%s2295 + $0x8] sm:$0xf]
    %v2299 = vld [vmem:[%s2295 + $0xc] sm:$0xf]
    %v2300 = vld [vmem:[%s2295 + $0x10] sm:$0xf]
    %v2301 = vld [vmem:[%s2295 + $0x14] sm:$0xf]
    %v2302 = vld [vmem:[%s2295 + $0x18] sm:$0xf]
    %v2303 = vld [vmem:[%s2295 + $0x1c] sm:$0xf]
    %v2304 = vld [vmem:[%s2295 + $0x20] sm:$0xf]
    %v2305 = vld [vmem:[%s2295 + $0x24] sm:$0xf]
    %v2306 = vld [vmem:[%s2295 + $0x28] sm:$0xf]
    %v2307 = vld [vmem:[%s2295 + $0x2c] sm:$0xf]
    %v2308 = vld [vmem:[%s2295 + $0x30] sm:$0xf]
    %v2309 = vld [vmem:[%s2295 + $0x34] sm:$0xf]
    %v2310 = vld [vmem:[%s2295 + $0x38] sm:$0xf]
    %v2311 = vld [vmem:[%s2295 + $0x3c] sm:$0xf]
    %v2328 = vunpack.c.l.b16 %v2296
    %v2329 = vunpack.c.l.b16 %v2297
    %v2330 = vunpack.c.l.b16 %v2298
    %v2331 = vunpack.c.l.b16 %v2299
    %v2332 = vunpack.c.l.b16 %v2300
    %v2333 = vunpack.c.l.b16 %v2301
    %v2334 = vunpack.c.l.b16 %v2302
    %v2335 = vunpack.c.l.b16 %v2303
    %v2336 = vunpack.c.l.b16 %v2304
    %v2337 = vunpack.c.l.b16 %v2305
    %v2338 = vunpack.c.l.b16 %v2306
    %v2339 = vunpack.c.l.b16 %v2307
    %v2340 = vunpack.c.l.b16 %v2308
    %v2341 = vunpack.c.l.b16 %v2309
    %v2342 = vunpack.c.l.b16 %v2310
    %v2343 = vunpack.c.l.b16 %v2311
    %v2344 = vpack.c.b16 %v2329, %v2328
    %v2345 = vpack.c.b16 %v2331, %v2330
    %v2346 = vpack.c.b16 %v2333, %v2332
    %v2347 = vpack.c.b16 %v2335, %v2334
    %v2348 = vpack.c.b16 %v2337, %v2336
    %v2349 = vpack.c.b16 %v2339, %v2338
    %v2350 = vpack.c.b16 %v2341, %v2340
    %v2351 = vpack.c.b16 %v2343, %v2342
    %2360 = vmatprep.subr.bf16.mxu0 0
    %2361 = vmatpush1.bf16.msra.mxu0 %v2351
    %2362 = vmatprep.subr.bf16.mxu0 0
    %2363 = vmatpush1.bf16.msra.mxu0 %v2350
    %2364 = vmatprep.subr.bf16.mxu0 0
    %2365 = vmatpush1.bf16.msra.mxu0 %v2349
    %2366 = vmatprep.subr.bf16.mxu0 0
    %2367 = vmatpush1.bf16.msra.mxu0 %v2348
    %2368 = vmatprep.subr.bf16.mxu0 0
    %2369 = vmatpush1.bf16.msra.mxu0 %v2347
    %2370 = vmatprep.subr.bf16.mxu0 0
    %2371 = vmatpush1.bf16.msra.mxu0 %v2346
    %2372 = vmatprep.subr.bf16.mxu0 0
    %2373 = vmatpush1.bf16.msra.mxu0 %v2345
    %2374 = vmatprep.subr.bf16.mxu0 0
    %2375 = vmatpush1.bf16.msra.mxu0 %v2344
    %2376 = vmatprep.subr.bf16.mxu0 0
    %2377 = vmatpush2.bf16.msra.mxu0 0
    %2378 = vmatprep.subr.bf16.mxu0 0
    %2379 = vmatpush2.bf16.msra.mxu0 0
    %2380 = vmatprep.subr.bf16.mxu0 0
    %2381 = vmatpush2.bf16.msra.mxu0 0
    %2382 = vmatprep.subr.bf16.mxu0 0
    %2383 = vmatpush2.bf16.msra.mxu0 0
    %2384 = vmatprep.subr.bf16.mxu0 0
    %2385 = vmatpush2.bf16.msra.mxu0 0
    %2386 = vmatprep.subr.bf16.mxu0 0
    %2387 = vmatpush2.bf16.msra.mxu0 0
    %2388 = vmatprep.subr.bf16.mxu0 0
    %2389 = vmatpush2.bf16.msra.mxu0 0
    %2390 = vmatprep.subr.bf16.mxu0 0
    %2391 = vmatpush2.bf16.msra.mxu0 0
    %2392 = vmatprep.mubr.bf16.mxu0 0
    %2393 = vmatmul.mubr.bf16.gmra.mxu0 %v2294
    %v2394 = vpop.f32.mrf.mxu0
    %v2395 = vadd.f32 0.0, %v2394
    %v2396 = vpop.f32.mrf.mxu0
    %v2397 = vpop.f32.mrf.mxu0
    %v2398 = vpop.f32.mrf.mxu0
    %2399 = vdwg.mxu0
    %v2400 = vadd.f32 %v2285, %v2395
    %s2401 = scalar_lea.vmem [#allocation4], 3
    %v2402 = vld [vmem:[%s2401] ss:$8 sm:$0xf]
    %v2403 = vld [vmem:[%s2401] ss:$8 sm:$0xf0]
    %v2404 = vor.u32 %v2402, %v2403
    %v2405 = vpack.c.bf16 %v2404, %v2404
    %s2406 = scalar_lea.vmem %s4, 192
    %v2407 = vld [vmem:[%s2406] sm:$0xf]
    %v2408 = vld [vmem:[%s2406 + $0x4] sm:$0xf]
    %v2409 = vld [vmem:[%s2406 + $0x8] sm:$0xf]
    %v2410 = vld [vmem:[%s2406 + $0xc] sm:$0xf]
    %v2411 = vld [vmem:[%s2406 + $0x10] sm:$0xf]
    %v2412 = vld [vmem:[%s2406 + $0x14] sm:$0xf]
    %v2413 = vld [vmem:[%s2406 + $0x18] sm:$0xf]
    %v2414 = vld [vmem:[%s2406 + $0x1c] sm:$0xf]
    %v2415 = vld [vmem:[%s2406 + $0x20] sm:$0xf]
    %v2416 = vld [vmem:[%s2406 + $0x24] sm:$0xf]
    %v2417 = vld [vmem:[%s2406 + $0x28] sm:$0xf]
    %v2418 = vld [vmem:[%s2406 + $0x2c] sm:$0xf]
    %v2419 = vld [vmem:[%s2406 + $0x30] sm:$0xf]
    %v2420 = vld [vmem:[%s2406 + $0x34] sm:$0xf]
    %v2421 = vld [vmem:[%s2406 + $0x38] sm:$0xf]
    %v2422 = vld [vmem:[%s2406 + $0x3c] sm:$0xf]
    %v2439 = vunpack.c.l.b16 %v2407
    %v2440 = vunpack.c.l.b16 %v2408
    %v2441 = vunpack.c.l.b16 %v2409
    %v2442 = vunpack.c.l.b16 %v2410
    %v2443 = vunpack.c.l.b16 %v2411
    %v2444 = vunpack.c.l.b16 %v2412
    %v2445 = vunpack.c.l.b16 %v2413
    %v2446 = vunpack.c.l.b16 %v2414
    %v2447 = vunpack.c.l.b16 %v2415
    %v2448 = vunpack.c.l.b16 %v2416
    %v2449 = vunpack.c.l.b16 %v2417
    %v2450 = vunpack.c.l.b16 %v2418
    %v2451 = vunpack.c.l.b16 %v2419
    %v2452 = vunpack.c.l.b16 %v2420
    %v2453 = vunpack.c.l.b16 %v2421
    %v2454 = vunpack.c.l.b16 %v2422
    %v2455 = vpack.c.b16 %v2440, %v2439
    %v2456 = vpack.c.b16 %v2442, %v2441
    %v2457 = vpack.c.b16 %v2444, %v2443
    %v2458 = vpack.c.b16 %v2446, %v2445
    %v2459 = vpack.c.b16 %v2448, %v2447
    %v2460 = vpack.c.b16 %v2450, %v2449
    %v2461 = vpack.c.b16 %v2452, %v2451
    %v2462 = vpack.c.b16 %v2454, %v2453
    %2471 = vmatprep.subr.bf16.mxu0 0
    %2472 = vmatpush1.bf16.msra.mxu0 %v2462
    %2473 = vmatprep.subr.bf16.mxu0 0
    %2474 = vmatpush1.bf16.msra.mxu0 %v2461
    %2475 = vmatprep.subr.bf16.mxu0 0
    %2476 = vmatpush1.bf16.msra.mxu0 %v2460
    %2477 = vmatprep.subr.bf16.mxu0 0
    %2478 = vmatpush1.bf16.msra.mxu0 %v2459
    %2479 = vmatprep.subr.bf16.mxu0 0
    %2480 = vmatpush1.bf16.msra.mxu0 %v2458
    %2481 = vmatprep.subr.bf16.mxu0 0
    %2482 = vmatpush1.bf16.msra.mxu0 %v2457
    %2483 = vmatprep.subr.bf16.mxu0 0
    %2484 = vmatpush1.bf16.msra.mxu0 %v2456
    %2485 = vmatprep.subr.bf16.mxu0 0
    %2486 = vmatpush1.bf16.msra.mxu0 %v2455
    %2487 = vmatprep.subr.bf16.mxu0 0
    %2488 = vmatpush2.bf16.msra.mxu0 0
    %2489 = vmatprep.subr.bf16.mxu0 0
    %2490 = vmatpush2.bf16.msra.mxu0 0
    %2491 = vmatprep.subr.bf16.mxu0 0
    %2492 = vmatpush2.bf16.msra.mxu0 0
    %2493 = vmatprep.subr.bf16.mxu0 0
    %2494 = vmatpush2.bf16.msra.mxu0 0
    %2495 = vmatprep.subr.bf16.mxu0 0
    %2496 = vmatpush2.bf16.msra.mxu0 0
    %2497 = vmatprep.subr.bf16.mxu0 0
    %2498 = vmatpush2.bf16.msra.mxu0 0
    %2499 = vmatprep.subr.bf16.mxu0 0
    %2500 = vmatpush2.bf16.msra.mxu0 0
    %2501 = vmatprep.subr.bf16.mxu0 0
    %2502 = vmatpush2.bf16.msra.mxu0 0
    %2503 = vmatprep.mubr.bf16.mxu0 0
    %2504 = vmatmul.mubr.bf16.gmra.mxu0 %v2405
    %v2505 = vpop.f32.mrf.mxu0
    %v2506 = vadd.f32 0.0, %v2505
    %v2507 = vpop.f32.mrf.mxu0
    %v2508 = vpop.f32.mrf.mxu0
    %v2509 = vpop.f32.mrf.mxu0
    %2510 = vdwg.mxu0
    %v2511 = vadd.f32 %v2400, %v2506
    %s2512 = scalar_lea.vmem [#allocation4], 4
    %v2513 = vld [vmem:[%s2512] ss:$8 sm:$0xf]
    %v2514 = vld [vmem:[%s2512] ss:$8 sm:$0xf0]
    %v2515 = vor.u32 %v2513, %v2514
    %v2516 = vpack.c.bf16 %v2515, %v2515
    %s2517 = scalar_lea.vmem %s4, 256
    %v2518 = vld [vmem:[%s2517] sm:$0xf]
    %v2519 = vld [vmem:[%s2517 + $0x4] sm:$0xf]
    %v2520 = vld [vmem:[%s2517 + $0x8] sm:$0xf]
    %v2521 = vld [vmem:[%s2517 + $0xc] sm:$0xf]
    %v2522 = vld [vmem:[%s2517 + $0x10] sm:$0xf]
    %v2523 = vld [vmem:[%s2517 + $0x14] sm:$0xf]
    %v2524 = vld [vmem:[%s2517 + $0x18] sm:$0xf]
    %v2525 = vld [vmem:[%s2517 + $0x1c] sm:$0xf]
    %v2526 = vld [vmem:[%s2517 + $0x20] sm:$0xf]
    %v2527 = vld [vmem:[%s2517 + $0x24] sm:$0xf]
    %v2528 = vld [vmem:[%s2517 + $0x28] sm:$0xf]
    %v2529 = vld [vmem:[%s2517 + $0x2c] sm:$0xf]
    %v2530 = vld [vmem:[%s2517 + $0x30] sm:$0xf]
    %v2531 = vld [vmem:[%s2517 + $0x34] sm:$0xf]
    %v2532 = vld [vmem:[%s2517 + $0x38] sm:$0xf]
    %v2533 = vld [vmem:[%s2517 + $0x3c] sm:$0xf]
    %v2550 = vunpack.c.l.b16 %v2518
    %v2551 = vunpack.c.l.b16 %v2519
    %v2552 = vunpack.c.l.b16 %v2520
    %v2553 = vunpack.c.l.b16 %v2521
    %v2554 = vunpack.c.l.b16 %v2522
    %v2555 = vunpack.c.l.b16 %v2523
    %v2556 = vunpack.c.l.b16 %v2524
    %v2557 = vunpack.c.l.b16 %v2525
    %v2558 = vunpack.c.l.b16 %v2526
    %v2559 = vunpack.c.l.b16 %v2527
    %v2560 = vunpack.c.l.b16 %v2528
    %v2561 = vunpack.c.l.b16 %v2529
    %v2562 = vunpack.c.l.b16 %v2530
    %v2563 = vunpack.c.l.b16 %v2531
    %v2564 = vunpack.c.l.b16 %v2532
    %v2565 = vunpack.c.l.b16 %v2533
    %v2566 = vpack.c.b16 %v2551, %v2550
    %v2567 = vpack.c.b16 %v2553, %v2552
    %v2568 = vpack.c.b16 %v2555, %v2554
    %v2569 = vpack.c.b16 %v2557, %v2556
    %v2570 = vpack.c.b16 %v2559, %v2558
    %v2571 = vpack.c.b16 %v2561, %v2560
    %v2572 = vpack.c.b16 %v2563, %v2562
    %v2573 = vpack.c.b16 %v2565, %v2564
    %2582 = vmatprep.subr.bf16.mxu0 0
    %2583 = vmatpush1.bf16.msra.mxu0 %v2573
    %2584 = vmatprep.subr.bf16.mxu0 0
    %2585 = vmatpush1.bf16.msra.mxu0 %v2572
    %2586 = vmatprep.subr.bf16.mxu0 0
    %2587 = vmatpush1.bf16.msra.mxu0 %v2571
    %2588 = vmatprep.subr.bf16.mxu0 0
    %2589 = vmatpush1.bf16.msra.mxu0 %v2570
    %2590 = vmatprep.subr.bf16.mxu0 0
    %2591 = vmatpush1.bf16.msra.mxu0 %v2569
    %2592 = vmatprep.subr.bf16.mxu0 0
    %2593 = vmatpush1.bf16.msra.mxu0 %v2568
    %2594 = vmatprep.subr.bf16.mxu0 0
    %2595 = vmatpush1.bf16.msra.mxu0 %v2567
    %2596 = vmatprep.subr.bf16.mxu0 0
    %2597 = vmatpush1.bf16.msra.mxu0 %v2566
    %2598 = vmatprep.subr.bf16.mxu0 0
    %2599 = vmatpush2.bf16.msra.mxu0 0
    %2600 = vmatprep.subr.bf16.mxu0 0
    %2601 = vmatpush2.bf16.msra.mxu0 0
    %2602 = vmatprep.subr.bf16.mxu0 0
    %2603 = vmatpush2.bf16.msra.mxu0 0
    %2604 = vmatprep.subr.bf16.mxu0 0
    %2605 = vmatpush2.bf16.msra.mxu0 0
    %2606 = vmatprep.subr.bf16.mxu0 0
    %2607 = vmatpush2.bf16.msra.mxu0 0
    %2608 = vmatprep.subr.bf16.mxu0 0
    %2609 = vmatpush2.bf16.msra.mxu0 0
    %2610 = vmatprep.subr.bf16.mxu0 0
    %2611 = vmatpush2.bf16.msra.mxu0 0
    %2612 = vmatprep.subr.bf16.mxu0 0
    %2613 = vmatpush2.bf16.msra.mxu0 0
    %2614 = vmatprep.mubr.bf16.mxu0 0
    %2615 = vmatmul.mubr.bf16.gmra.mxu0 %v2516
    %v2616 = vpop.f32.mrf.mxu0
    %v2617 = vadd.f32 0.0, %v2616
    %v2618 = vpop.f32.mrf.mxu0
    %v2619 = vpop.f32.mrf.mxu0
    %v2620 = vpop.f32.mrf.mxu0
    %2621 = vdwg.mxu0
    %v2622 = vadd.f32 %v2511, %v2617
    %v2623 = vlaneseq
    %v2624 = vshrl.u32 %v2623, 7
    %v2625 = vsub.s32 3, %v2624
    %v2626 = vrot.slane %v52, %v2625
    %v2627 = vadd.f32 %v2622, %v2626
    %2628 = vst [vmem:[%s6] sm:$0xff] %v2627
    // Predicated region
    $region34: #{conv_base_forward.1} parent=1 // pred_check
      _
    $region35: #{conv_base_forward.1} parent=1 // pred_check_branch
      %2630 = sbr.rel (0) target = $region37
    $region36: #{conv_base_forward.1} parent=1 // pred_region
      _
    $region37: #{conv_base_forward.1} parent=1 // pred_fallthru
      _
    // Predicated region
    $region38: #{conv_base_forward.1} parent=1 // pred_check
      _
    $region39: #{conv_base_forward.1} parent=1 // pred_check_branch
      %2632 = sbr.rel (0) target = $region41
    $region40: #{conv_base_forward.1} parent=1 // pred_region
      _
    $region41: #{conv_base_forward.1} parent=1 // pred_fallthru
      _
    %2633 = vsyncpa [#allocation6], 1
    %2634 = vsyncpa [#allocation8], 1

</llo_original>
